<compile_context>
chip_gen: v5e
topology: v5e:2x2
jax: 0.10.0
libtpu: 0.0.40
codegen_flags: <defaults>
</compile_context>

<pallas_src>
import functools

import jax
import jax.numpy as jnp
import numpy as np
from jax import lax
from jax.experimental import pallas as pl
from jax.experimental.pallas import tpu as pltpu

NEG_SLOPE = 0.01   # torch.nn.LeakyReLU default
EPS = 1e-5         # nn.InstanceNorm2d default


def _halo_masks(H, W):
    """(9, H*W) f32 masks: mask[kh*3+kw, s] = 1 iff the 3x3 tap (dh,dw)=(kh-1,kw-1)
    applied at flat position s = h*W + w stays inside the image (the sample the conv's
    zero-padding would supply is 0).  Center tap (k=4) is all ones.
    Assumes pltpu.roll has jnp.roll semantics and |dh*W+dw| < H*W (holds for H,W >= 2)."""
    S = H * W
    hh, ww = np.divmod(np.arange(S), W)
    m = np.zeros((9, S), np.float32)
    for kh in range(3):
        for kw in range(3):
            dh, dw = kh - 1, kw - 1
            ok = (hh + dh >= 0) & (hh + dh < H) & (ww + dw >= 0) & (ww + dw < W)
            m[kh * 3 + kw] = ok.astype(np.float32)
    return jnp.asarray(m)


def _fused_kernel(H, W, x_ref, w_ref, pw_ref, o_ref):
    """All four blocks, for the Bt batch elements of this grid step.

    x_ref : (Bt, Cpad, S)           activations (channels on sublanes, flat spatial on lanes)
    w_ref : (nblk, 9, Cpad, S)      depthwise tap weights with edge masks pre-folded in
    pw_ref: (nblk, Cpad, Cpad)      zero-padded pointwise (1x1) weight matrices
    o_ref : (Bt, Cpad, S)
    """
    S = H * W
    Bt = x_ref.shape[0]
    n_blocks = pw_ref.shape[0]

    # Independent per-batch-element chains, interleaved for ILP.
    ys = [x_ref[b] for b in range(Bt)]

    for i in range(n_blocks):
        # --- depthwise 3x3 (stride 1, pad 1): 8 lane-rolls + FMAs; center tap inits acc.
        w_c = w_ref[i, 4]                                    # (Cpad, S)
        accs = [ys[b] * w_c for b in range(Bt)]
        for kh in range(3):
            for kw in range(3):
                if kh == 1 and kw == 1:
                    continue
                delta = (kh - 1) * W + (kw - 1)              # flat-index offset of this tap
                shift = (-delta) % S                         # circular; edges masked via w_ref
                w_k = w_ref[i, kh * 3 + kw]                  # (Cpad, S), mask already folded in
                for b in range(Bt):
                    accs[b] = accs[b] + pltpu.roll(ys[b], shift=shift, axis=1) * w_k

        # --- pointwise 1x1 conv on the (otherwise idle) MXU.  Conv biases are omitted:
        #     per-channel constants are exactly cancelled by InstanceNorm below.
        pw = pw_ref[i]                                       # (Cpad, Cpad)
        for b in range(Bt):
            z = jnp.dot(pw, accs[b], preferred_element_type=jnp.float32,
                        precision=lax.Precision.HIGHEST)
            # --- InstanceNorm2d (affine=False, biased variance), one-pass statistics.
            mean = jnp.mean(z, axis=1, keepdims=True)
            var = jnp.maximum(jnp.mean(z * z, axis=1, keepdims=True) - mean * mean, 0.0)
            zn = (z - mean) * lax.rsqrt(var + EPS)
            # --- LeakyReLU
            ys[b] = jnp.where(zn > 0.0, zn, NEG_SLOPE * zn)

    for b in range(Bt):
        o_ref[b] = ys[b]


def _pack_params(params, H, W, Cpad):
    """Fold the conv weights into two lane-friendly buffers.

    w_planes[i, k, c, s] = dw_w_i[c, k] * edge_mask_k[s]   (zero rows for padded channels)
    pw_pack [i, :co, :ci] = pw_w_i                          (zero elsewhere)

    Depthwise/pointwise biases are deliberately NOT packed: a per-channel constant added
    before InstanceNorm is removed exactly by its mean subtraction.
    """
    S = H * W
    n_blocks = len(params)
    masks = _halo_masks(H, W)                                      # (9, S)
    w_planes = jnp.zeros((n_blocks, 9, Cpad, S), jnp.float32)
    pw_pack = jnp.zeros((n_blocks, Cpad, Cpad), jnp.float32)
    for i, (dw_w, _dw_b, pw_w, _pw_b) in enumerate(params):
        ci, co = dw_w.shape[0], pw_w.shape[0]
        plane = dw_w.T[:, :, None] * masks[:, None, :]             # (9, ci, S)
        w_planes = w_planes.at[i, :, :ci, :].set(plane)
        pw_pack = pw_pack.at[i, :co, :ci].set(pw_w)
    return w_planes, pw_pack


def sparse_proj_layer(x_nchw, params, *, num_grid_steps=None):
    """SparseProjLayer.forward. Accepts NCHW (PyTorch layout), returns NCHW.

    num_grid_steps: how many grid steps the batch is split across.
      * default (B even): 2 parallel steps of B//2 elements -> both v7x TensorCores busy.
      * single-TC chips (v5e/v6e): pass 1 to fold the whole batch into one grid step.
    """
    B, C, H, W = x_nchw.shape
    S = H * W
    n_blocks = len(params)
    out_c = params[-1][2].shape[0]
    chans = [p[0].shape[0] for p in params] + [out_c]
    Cpad = -(-max(chans) // 8) * 8                       # round channels up to sublane (8)

    if num_grid_steps is None:
        num_grid_steps = 2 if (B >= 2 and B % 2 == 0) else 1
    assert B % num_grid_steps == 0, "batch must split evenly across grid steps"
    Bt = B // num_grid_steps

    x_flat = jnp.reshape(x_nchw, (B, C, S))              # NCHW is already (B,C,H*W)-contiguous
    if C < Cpad:
        x_flat = jnp.pad(x_flat, ((0, 0), (0, Cpad - C), (0, 0)))

    w_planes, pw_pack = _pack_params(params, H, W, Cpad)  # tiny, one-time prep

    out = pl.pallas_call(
        functools.partial(_fused_kernel, H, W),
        out_shape=jax.ShapeDtypeStruct((B, Cpad, S), jnp.float32),
        grid=(num_grid_steps,),
        in_specs=[
            pl.BlockSpec((Bt, Cpad, S), lambda g: (g, 0, 0)),
            pl.BlockSpec((n_blocks, 9, Cpad, S), lambda g: (0, 0, 0, 0)),
            pl.BlockSpec((n_blocks, Cpad, Cpad), lambda g: (0, 0, 0)),
        ],
        out_specs=pl.BlockSpec((Bt, Cpad, S), lambda g: (g, 0, 0)),
        compiler_params=pltpu.CompilerParams(dimension_semantics=("parallel",)),
    )(x_flat, w_planes, pw_pack)
    return out[:, :out_c, :].reshape(B, out_c, H, W)


def init_params(key, in_c, out_c):
    """Deterministic synthetic weights matching SparseProjLayer's shapes.

    torch depthwise weight (C,1,3,3)      -> stored here as (C, 9)
    torch depthwise bias   (C,)           -> (C, 1)
    torch pointwise weight (Cout,Cin,1,1) -> (Cout, Cin)
    torch pointwise bias   (Cout,)        -> (Cout, 1)
    (Biases are kept so the reference proves the InstanceNorm bias-cancellation.)
    """
    chans = [(in_c, in_c // 2), (in_c // 2, in_c // 4),
             (in_c // 4, in_c // 2), (in_c // 2, out_c)]
    params, k = [], key
    for ci, co in chans:
        k, k1, k2, k3, k4 = jax.random.split(k, 5)
        dw_w = jax.random.normal(k1, (ci, 9), jnp.float32) * 0.2
        dw_b = jax.random.normal(k2, (ci, 1), jnp.float32) * 0.05
        pw_w = jax.random.normal(k3, (co, ci), jnp.float32) / jnp.sqrt(float(ci))
        pw_b = jax.random.normal(k4, (co, 1), jnp.float32) * 0.05
        params.append((dw_w, dw_b, pw_w, pw_b))
    return params


def _reference(x_nchw, params):
    """Pure-jnp reference of SparseProjLayer.forward (with biases; correctness check)."""
    y = x_nchw
    for dw_w, dw_b, pw_w, pw_b in params:
        B, C, H, W = y.shape
        xp = jnp.pad(y, ((0, 0), (0, 0), (1, 1), (1, 1)))
        k33 = dw_w.reshape(C, 3, 3)
        acc = jnp.zeros_like(y)
        for kh in range(3):
            for kw in range(3):
                acc = acc + xp[:, :, kh:kh + H, kw:kw + W] * k33[:, kh, kw][None, :, None, None]
        acc = acc + dw_b.reshape(1, C, 1, 1)
        z = jnp.einsum('oc,bchw->bohw', pw_w, acc) + pw_b.reshape(1, -1, 1, 1)
        mu = z.mean(axis=(2, 3), keepdims=True)
        var = ((z - mu) ** 2).mean(axis=(2, 3), keepdims=True)
        zn = (z - mu) / jnp.sqrt(var + EPS)
        y = jnp.where(zn > 0, zn, NEG_SLOPE * zn)
    return y


if __name__ == "__main__":
    key = jax.random.PRNGKey(0)
    B, in_c, out_c, H, W = 2, 8, 8, 16, 16
    kx, kp = jax.random.split(key)
    x = jax.random.normal(kx, (B, in_c, H, W), jnp.float32)   # NCHW like PyTorch
    params = init_params(kp, in_c, out_c)

    y_ref = _reference(x, params)

    # Default: 2 parallel grid steps (keeps both v7x TensorCores busy).
    y = jax.jit(sparse_proj_layer)(x, params)
    jax.block_until_ready(y)
    assert y.shape == (B, out_c, H, W)
    assert bool(jnp.all(jnp.isfinite(y)))
    err = float(jnp.max(jnp.abs(y - y_ref)))
    assert err < 2e-3, f"max |pallas - reference| = {err}"

    # Single-step variant (whole batch inside one grid step) — the v5e/v6e setting.
    y1 = jax.jit(functools.partial(sparse_proj_layer, num_grid_steps=1))(x, params)
    jax.block_until_ready(y1)
    err1 = float(jnp.max(jnp.abs(y1 - y_ref)))
    assert err1 < 2e-3, f"max |pallas(1-step) - reference| = {err1}"

    print("KERNEL_OK")
</pallas_src>

<mosaic_0001>
module attributes {stable_mosaic.version = 11 : i64} {
  func.func @_fused_kernel(%arg0: i32, %arg1: memref<1x8x256xf32, #tpu.memory_space<vmem>>, %arg2: memref<4x9x8x256xf32, #tpu.memory_space<vmem>>, %arg3: memref<4x8x8xf32, #tpu.memory_space<vmem>>, %arg4: memref<1x8x256xf32, #tpu.memory_space<vmem>>) attributes {dimension_semantics = [#tpu.dimension_semantics<parallel>], iteration_bounds = array<i64: 2>, scalar_prefetch = 0 : i64, scratch_operands = 0 : i64, tpu.core_type = #tpu.core_type<tc>, window_params = [{transform_indices = @transform_0, window_bounds = array<i64: 1, 8, 256>}, {pipeline_mode = #tpu.pipeline_mode<synchronous>, transform_indices = @transform_1, window_bounds = array<i64: 4, 9, 8, 256>}, {pipeline_mode = #tpu.pipeline_mode<synchronous>, transform_indices = @transform_2, window_bounds = array<i64: 4, 8, 8>}, {transform_indices = @transform_3, window_bounds = array<i64: 1, 8, 256>}]} {
    %c0 = arith.constant 0 : index
    %c0_0 = arith.constant 0 : index
    %c0_1 = arith.constant 0 : index
    %0 = vector.load %arg1[%c0, %c0_0, %c0_1] : memref<1x8x256xf32, #tpu.memory_space<vmem>>, vector<1x8x256xf32>
    %1 = vector.shape_cast %0 : vector<1x8x256xf32> to vector<8x256xf32>
    %c0_2 = arith.constant 0 : index
    %c4 = arith.constant 4 : index
    %c0_3 = arith.constant 0 : index
    %c0_4 = arith.constant 0 : index
    %2 = vector.load %arg2[%c0_2, %c4, %c0_3, %c0_4] : memref<4x9x8x256xf32, #tpu.memory_space<vmem>>, vector<1x1x8x256xf32>
    %3 = vector.shape_cast %2 : vector<1x1x8x256xf32> to vector<8x256xf32>
    %4 = arith.mulf %1, %3 : vector<8x256xf32>
    %c0_5 = arith.constant 0 : index
    %c0_6 = arith.constant 0 : index
    %c0_7 = arith.constant 0 : index
    %c0_8 = arith.constant 0 : index
    %5 = vector.load %arg2[%c0_5, %c0_6, %c0_7, %c0_8] : memref<4x9x8x256xf32, #tpu.memory_space<vmem>>, vector<1x1x8x256xf32>
    %6 = vector.shape_cast %5 : vector<1x1x8x256xf32> to vector<8x256xf32>
    %c17_i32 = arith.constant 17 : i32
    %7 = tpu.dynamic_rotate %1 by %c17_i32 dim 1 : vector<8x256xf32>, i32 -> vector<8x256xf32>
    %8 = arith.mulf %7, %6 : vector<8x256xf32>
    %9 = arith.addf %4, %8 : vector<8x256xf32>
    %c0_9 = arith.constant 0 : index
    %c1 = arith.constant 1 : index
    %c0_10 = arith.constant 0 : index
    %c0_11 = arith.constant 0 : index
    %10 = vector.load %arg2[%c0_9, %c1, %c0_10, %c0_11] : memref<4x9x8x256xf32, #tpu.memory_space<vmem>>, vector<1x1x8x256xf32>
    %11 = vector.shape_cast %10 : vector<1x1x8x256xf32> to vector<8x256xf32>
    %c16_i32 = arith.constant 16 : i32
    %12 = tpu.dynamic_rotate %1 by %c16_i32 dim 1 : vector<8x256xf32>, i32 -> vector<8x256xf32>
    %13 = arith.mulf %12, %11 : vector<8x256xf32>
    %14 = arith.addf %9, %13 : vector<8x256xf32>
    %c0_12 = arith.constant 0 : index
    %c2 = arith.constant 2 : index
    %c0_13 = arith.constant 0 : index
    %c0_14 = arith.constant 0 : index
    %15 = vector.load %arg2[%c0_12, %c2, %c0_13, %c0_14] : memref<4x9x8x256xf32, #tpu.memory_space<vmem>>, vector<1x1x8x256xf32>
    %16 = vector.shape_cast %15 : vector<1x1x8x256xf32> to vector<8x256xf32>
    %c15_i32 = arith.constant 15 : i32
    %17 = tpu.dynamic_rotate %1 by %c15_i32 dim 1 : vector<8x256xf32>, i32 -> vector<8x256xf32>
    %18 = arith.mulf %17, %16 : vector<8x256xf32>
    %19 = arith.addf %14, %18 : vector<8x256xf32>
    %c0_15 = arith.constant 0 : index
    %c3 = arith.constant 3 : index
    %c0_16 = arith.constant 0 : index
    %c0_17 = arith.constant 0 : index
    %20 = vector.load %arg2[%c0_15, %c3, %c0_16, %c0_17] : memref<4x9x8x256xf32, #tpu.memory_space<vmem>>, vector<1x1x8x256xf32>
    %21 = vector.shape_cast %20 : vector<1x1x8x256xf32> to vector<8x256xf32>
    %c1_i32 = arith.constant 1 : i32
    %22 = tpu.dynamic_rotate %1 by %c1_i32 dim 1 : vector<8x256xf32>, i32 -> vector<8x256xf32>
    %23 = arith.mulf %22, %21 : vector<8x256xf32>
    %24 = arith.addf %19, %23 : vector<8x256xf32>
    %c0_18 = arith.constant 0 : index
    %c5 = arith.constant 5 : index
    %c0_19 = arith.constant 0 : index
    %c0_20 = arith.constant 0 : index
    %25 = vector.load %arg2[%c0_18, %c5, %c0_19, %c0_20] : memref<4x9x8x256xf32, #tpu.memory_space<vmem>>, vector<1x1x8x256xf32>
    %26 = vector.shape_cast %25 : vector<1x1x8x256xf32> to vector<8x256xf32>
    %c255_i32 = arith.constant 255 : i32
    %27 = tpu.dynamic_rotate %1 by %c255_i32 dim 1 : vector<8x256xf32>, i32 -> vector<8x256xf32>
    %28 = arith.mulf %27, %26 : vector<8x256xf32>
    %29 = arith.addf %24, %28 : vector<8x256xf32>
    %c0_21 = arith.constant 0 : index
    %c6 = arith.constant 6 : index
    %c0_22 = arith.constant 0 : index
    %c0_23 = arith.constant 0 : index
    %30 = vector.load %arg2[%c0_21, %c6, %c0_22, %c0_23] : memref<4x9x8x256xf32, #tpu.memory_space<vmem>>, vector<1x1x8x256xf32>
    %31 = vector.shape_cast %30 : vector<1x1x8x256xf32> to vector<8x256xf32>
    %c241_i32 = arith.constant 241 : i32
    %32 = tpu.dynamic_rotate %1 by %c241_i32 dim 1 : vector<8x256xf32>, i32 -> vector<8x256xf32>
    %33 = arith.mulf %32, %31 : vector<8x256xf32>
    %34 = arith.addf %29, %33 : vector<8x256xf32>
    %c0_24 = arith.constant 0 : index
    %c7 = arith.constant 7 : index
    %c0_25 = arith.constant 0 : index
    %c0_26 = arith.constant 0 : index
    %35 = vector.load %arg2[%c0_24, %c7, %c0_25, %c0_26] : memref<4x9x8x256xf32, #tpu.memory_space<vmem>>, vector<1x1x8x256xf32>
    %36 = vector.shape_cast %35 : vector<1x1x8x256xf32> to vector<8x256xf32>
    %c240_i32 = arith.constant 240 : i32
    %37 = tpu.dynamic_rotate %1 by %c240_i32 dim 1 : vector<8x256xf32>, i32 -> vector<8x256xf32>
    %38 = arith.mulf %37, %36 : vector<8x256xf32>
    %39 = arith.addf %34, %38 : vector<8x256xf32>
    %c0_27 = arith.constant 0 : index
    %c8 = arith.constant 8 : index
    %c0_28 = arith.constant 0 : index
    %c0_29 = arith.constant 0 : index
    %40 = vector.load %arg2[%c0_27, %c8, %c0_28, %c0_29] : memref<4x9x8x256xf32, #tpu.memory_space<vmem>>, vector<1x1x8x256xf32>
    %41 = vector.shape_cast %40 : vector<1x1x8x256xf32> to vector<8x256xf32>
    %c239_i32 = arith.constant 239 : i32
    %42 = tpu.dynamic_rotate %1 by %c239_i32 dim 1 : vector<8x256xf32>, i32 -> vector<8x256xf32>
    %43 = arith.mulf %42, %41 : vector<8x256xf32>
    %44 = arith.addf %39, %43 : vector<8x256xf32>
    %c0_30 = arith.constant 0 : index
    %c0_31 = arith.constant 0 : index
    %c0_32 = arith.constant 0 : index
    %45 = vector.load %arg3[%c0_30, %c0_31, %c0_32] : memref<4x8x8xf32, #tpu.memory_space<vmem>>, vector<1x8x8xf32>
    %46 = vector.shape_cast %45 : vector<1x8x8xf32> to vector<8x8xf32>
    %cst = arith.constant dense<0.000000e+00> : vector<8x256xf32>
    %47 = tpu.matmul %46, %44, %cst {dimension_numbers = #tpu.dot_dimension_numbers<[1], [0], [0], [1], [0, 0, 1, 1], [], []>, precision = #tpu.contract_precision<fp32>} : vector<8x8xf32>, vector<8x256xf32>, vector<8x256xf32> -> vector<8x256xf32>
    %cst_33 = arith.constant dense<0.000000e+00> : vector<8xf32>
    %48 = vector.multi_reduction <add>, %47, %cst_33 [1] : vector<8x256xf32> to vector<8xf32>
    %49 = vector.shape_cast %48 : vector<8xf32> to vector<8x1xf32>
    %cst_34 = arith.constant 2.560000e+02 : f32
    %50 = vector.broadcast %cst_34 : f32 to vector<8x1xf32>
    %51 = arith.divf %49, %50 : vector<8x1xf32>
    %52 = arith.mulf %47, %47 : vector<8x256xf32>
    %cst_35 = arith.constant dense<0.000000e+00> : vector<8xf32>
    %53 = vector.multi_reduction <add>, %52, %cst_35 [1] : vector<8x256xf32> to vector<8xf32>
    %54 = vector.shape_cast %53 : vector<8xf32> to vector<8x1xf32>
    %cst_36 = arith.constant 2.560000e+02 : f32
    %55 = vector.broadcast %cst_36 : f32 to vector<8x1xf32>
    %56 = arith.divf %54, %55 : vector<8x1xf32>
    %57 = arith.mulf %51, %51 : vector<8x1xf32>
    %58 = arith.subf %56, %57 : vector<8x1xf32>
    %cst_37 = arith.constant 0.000000e+00 : f32
    %59 = vector.broadcast %cst_37 : f32 to vector<8x1xf32>
    %60 = arith.maximumf %58, %59 : vector<8x1xf32>
    %61 = vector.broadcast %51 : vector<8x1xf32> to vector<8x256xf32>
    %62 = arith.subf %47, %61 : vector<8x256xf32>
    %cst_38 = arith.constant 9.99999974E-6 : f32
    %63 = vector.broadcast %cst_38 : f32 to vector<8x1xf32>
    %64 = arith.addf %60, %63 : vector<8x1xf32>
    %65 = math.rsqrt %64 : vector<8x1xf32>
    %66 = vector.broadcast %65 : vector<8x1xf32> to vector<8x256xf32>
    %67 = arith.mulf %62, %66 : vector<8x256xf32>
    %cst_39 = arith.constant 0.000000e+00 : f32
    %68 = vector.broadcast %cst_39 : f32 to vector<8x256xf32>
    %69 = arith.cmpf ogt, %67, %68 : vector<8x256xf32>
    %cst_40 = arith.constant 0.00999999977 : f32
    %70 = vector.broadcast %cst_40 : f32 to vector<8x256xf32>
    %71 = arith.mulf %70, %67 : vector<8x256xf32>
    %72 = arith.select %69, %67, %71 : vector<8x256xi1>, vector<8x256xf32>
    %c1_41 = arith.constant 1 : index
    %c4_42 = arith.constant 4 : index
    %c0_43 = arith.constant 0 : index
    %c0_44 = arith.constant 0 : index
    %73 = vector.load %arg2[%c1_41, %c4_42, %c0_43, %c0_44] : memref<4x9x8x256xf32, #tpu.memory_space<vmem>>, vector<1x1x8x256xf32>
    %74 = vector.shape_cast %73 : vector<1x1x8x256xf32> to vector<8x256xf32>
    %75 = arith.mulf %72, %74 : vector<8x256xf32>
    %c1_45 = arith.constant 1 : index
    %c0_46 = arith.constant 0 : index
    %c0_47 = arith.constant 0 : index
    %c0_48 = arith.constant 0 : index
    %76 = vector.load %arg2[%c1_45, %c0_46, %c0_47, %c0_48] : memref<4x9x8x256xf32, #tpu.memory_space<vmem>>, vector<1x1x8x256xf32>
    %77 = vector.shape_cast %76 : vector<1x1x8x256xf32> to vector<8x256xf32>
    %c17_i32_49 = arith.constant 17 : i32
    %78 = tpu.dynamic_rotate %72 by %c17_i32_49 dim 1 : vector<8x256xf32>, i32 -> vector<8x256xf32>
    %79 = arith.mulf %78, %77 : vector<8x256xf32>
    %80 = arith.addf %75, %79 : vector<8x256xf32>
    %c1_50 = arith.constant 1 : index
    %c1_51 = arith.constant 1 : index
    %c0_52 = arith.constant 0 : index
    %c0_53 = arith.constant 0 : index
    %81 = vector.load %arg2[%c1_50, %c1_51, %c0_52, %c0_53] : memref<4x9x8x256xf32, #tpu.memory_space<vmem>>, vector<1x1x8x256xf32>
    %82 = vector.shape_cast %81 : vector<1x1x8x256xf32> to vector<8x256xf32>
    %c16_i32_54 = arith.constant 16 : i32
    %83 = tpu.dynamic_rotate %72 by %c16_i32_54 dim 1 : vector<8x256xf32>, i32 -> vector<8x256xf32>
    %84 = arith.mulf %83, %82 : vector<8x256xf32>
    %85 = arith.addf %80, %84 : vector<8x256xf32>
    %c1_55 = arith.constant 1 : index
    %c2_56 = arith.constant 2 : index
    %c0_57 = arith.constant 0 : index
    %c0_58 = arith.constant 0 : index
    %86 = vector.load %arg2[%c1_55, %c2_56, %c0_57, %c0_58] : memref<4x9x8x256xf32, #tpu.memory_space<vmem>>, vector<1x1x8x256xf32>
    %87 = vector.shape_cast %86 : vector<1x1x8x256xf32> to vector<8x256xf32>
    %c15_i32_59 = arith.constant 15 : i32
    %88 = tpu.dynamic_rotate %72 by %c15_i32_59 dim 1 : vector<8x256xf32>, i32 -> vector<8x256xf32>
    %89 = arith.mulf %88, %87 : vector<8x256xf32>
    %90 = arith.addf %85, %89 : vector<8x256xf32>
    %c1_60 = arith.constant 1 : index
    %c3_61 = arith.constant 3 : index
    %c0_62 = arith.constant 0 : index
    %c0_63 = arith.constant 0 : index
    %91 = vector.load %arg2[%c1_60, %c3_61, %c0_62, %c0_63] : memref<4x9x8x256xf32, #tpu.memory_space<vmem>>, vector<1x1x8x256xf32>
    %92 = vector.shape_cast %91 : vector<1x1x8x256xf32> to vector<8x256xf32>
    %c1_i32_64 = arith.constant 1 : i32
    %93 = tpu.dynamic_rotate %72 by %c1_i32_64 dim 1 : vector<8x256xf32>, i32 -> vector<8x256xf32>
    %94 = arith.mulf %93, %92 : vector<8x256xf32>
    %95 = arith.addf %90, %94 : vector<8x256xf32>
    %c1_65 = arith.constant 1 : index
    %c5_66 = arith.constant 5 : index
    %c0_67 = arith.constant 0 : index
    %c0_68 = arith.constant 0 : index
    %96 = vector.load %arg2[%c1_65, %c5_66, %c0_67, %c0_68] : memref<4x9x8x256xf32, #tpu.memory_space<vmem>>, vector<1x1x8x256xf32>
    %97 = vector.shape_cast %96 : vector<1x1x8x256xf32> to vector<8x256xf32>
    %c255_i32_69 = arith.constant 255 : i32
    %98 = tpu.dynamic_rotate %72 by %c255_i32_69 dim 1 : vector<8x256xf32>, i32 -> vector<8x256xf32>
    %99 = arith.mulf %98, %97 : vector<8x256xf32>
    %100 = arith.addf %95, %99 : vector<8x256xf32>
    %c1_70 = arith.constant 1 : index
    %c6_71 = arith.constant 6 : index
    %c0_72 = arith.constant 0 : index
    %c0_73 = arith.constant 0 : index
    %101 = vector.load %arg2[%c1_70, %c6_71, %c0_72, %c0_73] : memref<4x9x8x256xf32, #tpu.memory_space<vmem>>, vector<1x1x8x256xf32>
    %102 = vector.shape_cast %101 : vector<1x1x8x256xf32> to vector<8x256xf32>
    %c241_i32_74 = arith.constant 241 : i32
    %103 = tpu.dynamic_rotate %72 by %c241_i32_74 dim 1 : vector<8x256xf32>, i32 -> vector<8x256xf32>
    %104 = arith.mulf %103, %102 : vector<8x256xf32>
    %105 = arith.addf %100, %104 : vector<8x256xf32>
    %c1_75 = arith.constant 1 : index
    %c7_76 = arith.constant 7 : index
    %c0_77 = arith.constant 0 : index
    %c0_78 = arith.constant 0 : index
    %106 = vector.load %arg2[%c1_75, %c7_76, %c0_77, %c0_78] : memref<4x9x8x256xf32, #tpu.memory_space<vmem>>, vector<1x1x8x256xf32>
    %107 = vector.shape_cast %106 : vector<1x1x8x256xf32> to vector<8x256xf32>
    %c240_i32_79 = arith.constant 240 : i32
    %108 = tpu.dynamic_rotate %72 by %c240_i32_79 dim 1 : vector<8x256xf32>, i32 -> vector<8x256xf32>
    %109 = arith.mulf %108, %107 : vector<8x256xf32>
    %110 = arith.addf %105, %109 : vector<8x256xf32>
    %c1_80 = arith.constant 1 : index
    %c8_81 = arith.constant 8 : index
    %c0_82 = arith.constant 0 : index
    %c0_83 = arith.constant 0 : index
    %111 = vector.load %arg2[%c1_80, %c8_81, %c0_82, %c0_83] : memref<4x9x8x256xf32, #tpu.memory_space<vmem>>, vector<1x1x8x256xf32>
    %112 = vector.shape_cast %111 : vector<1x1x8x256xf32> to vector<8x256xf32>
    %c239_i32_84 = arith.constant 239 : i32
    %113 = tpu.dynamic_rotate %72 by %c239_i32_84 dim 1 : vector<8x256xf32>, i32 -> vector<8x256xf32>
    %114 = arith.mulf %113, %112 : vector<8x256xf32>
    %115 = arith.addf %110, %114 : vector<8x256xf32>
    %c1_85 = arith.constant 1 : index
    %c0_86 = arith.constant 0 : index
    %c0_87 = arith.constant 0 : index
    %116 = vector.load %arg3[%c1_85, %c0_86, %c0_87] : memref<4x8x8xf32, #tpu.memory_space<vmem>>, vector<1x8x8xf32>
    %117 = vector.shape_cast %116 : vector<1x8x8xf32> to vector<8x8xf32>
    %cst_88 = arith.constant dense<0.000000e+00> : vector<8x256xf32>
    %118 = tpu.matmul %117, %115, %cst_88 {dimension_numbers = #tpu.dot_dimension_numbers<[1], [0], [0], [1], [0, 0, 1, 1], [], []>, precision = #tpu.contract_precision<fp32>} : vector<8x8xf32>, vector<8x256xf32>, vector<8x256xf32> -> vector<8x256xf32>
    %cst_89 = arith.constant dense<0.000000e+00> : vector<8xf32>
    %119 = vector.multi_reduction <add>, %118, %cst_89 [1] : vector<8x256xf32> to vector<8xf32>
    %120 = vector.shape_cast %119 : vector<8xf32> to vector<8x1xf32>
    %cst_90 = arith.constant 2.560000e+02 : f32
    %121 = vector.broadcast %cst_90 : f32 to vector<8x1xf32>
    %122 = arith.divf %120, %121 : vector<8x1xf32>
    %123 = arith.mulf %118, %118 : vector<8x256xf32>
    %cst_91 = arith.constant dense<0.000000e+00> : vector<8xf32>
    %124 = vector.multi_reduction <add>, %123, %cst_91 [1] : vector<8x256xf32> to vector<8xf32>
    %125 = vector.shape_cast %124 : vector<8xf32> to vector<8x1xf32>
    %cst_92 = arith.constant 2.560000e+02 : f32
    %126 = vector.broadcast %cst_92 : f32 to vector<8x1xf32>
    %127 = arith.divf %125, %126 : vector<8x1xf32>
    %128 = arith.mulf %122, %122 : vector<8x1xf32>
    %129 = arith.subf %127, %128 : vector<8x1xf32>
    %cst_93 = arith.constant 0.000000e+00 : f32
    %130 = vector.broadcast %cst_93 : f32 to vector<8x1xf32>
    %131 = arith.maximumf %129, %130 : vector<8x1xf32>
    %132 = vector.broadcast %122 : vector<8x1xf32> to vector<8x256xf32>
    %133 = arith.subf %118, %132 : vector<8x256xf32>
    %cst_94 = arith.constant 9.99999974E-6 : f32
    %134 = vector.broadcast %cst_94 : f32 to vector<8x1xf32>
    %135 = arith.addf %131, %134 : vector<8x1xf32>
    %136 = math.rsqrt %135 : vector<8x1xf32>
    %137 = vector.broadcast %136 : vector<8x1xf32> to vector<8x256xf32>
    %138 = arith.mulf %133, %137 : vector<8x256xf32>
    %cst_95 = arith.constant 0.000000e+00 : f32
    %139 = vector.broadcast %cst_95 : f32 to vector<8x256xf32>
    %140 = arith.cmpf ogt, %138, %139 : vector<8x256xf32>
    %cst_96 = arith.constant 0.00999999977 : f32
    %141 = vector.broadcast %cst_96 : f32 to vector<8x256xf32>
    %142 = arith.mulf %141, %138 : vector<8x256xf32>
    %143 = arith.select %140, %138, %142 : vector<8x256xi1>, vector<8x256xf32>
    %c2_97 = arith.constant 2 : index
    %c4_98 = arith.constant 4 : index
    %c0_99 = arith.constant 0 : index
    %c0_100 = arith.constant 0 : index
    %144 = vector.load %arg2[%c2_97, %c4_98, %c0_99, %c0_100] : memref<4x9x8x256xf32, #tpu.memory_space<vmem>>, vector<1x1x8x256xf32>
    %145 = vector.shape_cast %144 : vector<1x1x8x256xf32> to vector<8x256xf32>
    %146 = arith.mulf %143, %145 : vector<8x256xf32>
    %c2_101 = arith.constant 2 : index
    %c0_102 = arith.constant 0 : index
    %c0_103 = arith.constant 0 : index
    %c0_104 = arith.constant 0 : index
    %147 = vector.load %arg2[%c2_101, %c0_102, %c0_103, %c0_104] : memref<4x9x8x256xf32, #tpu.memory_space<vmem>>, vector<1x1x8x256xf32>
    %148 = vector.shape_cast %147 : vector<1x1x8x256xf32> to vector<8x256xf32>
    %c17_i32_105 = arith.constant 17 : i32
    %149 = tpu.dynamic_rotate %143 by %c17_i32_105 dim 1 : vector<8x256xf32>, i32 -> vector<8x256xf32>
    %150 = arith.mulf %149, %148 : vector<8x256xf32>
    %151 = arith.addf %146, %150 : vector<8x256xf32>
    %c2_106 = arith.constant 2 : index
    %c1_107 = arith.constant 1 : index
    %c0_108 = arith.constant 0 : index
    %c0_109 = arith.constant 0 : index
    %152 = vector.load %arg2[%c2_106, %c1_107, %c0_108, %c0_109] : memref<4x9x8x256xf32, #tpu.memory_space<vmem>>, vector<1x1x8x256xf32>
    %153 = vector.shape_cast %152 : vector<1x1x8x256xf32> to vector<8x256xf32>
    %c16_i32_110 = arith.constant 16 : i32
    %154 = tpu.dynamic_rotate %143 by %c16_i32_110 dim 1 : vector<8x256xf32>, i32 -> vector<8x256xf32>
    %155 = arith.mulf %154, %153 : vector<8x256xf32>
    %156 = arith.addf %151, %155 : vector<8x256xf32>
    %c2_111 = arith.constant 2 : index
    %c2_112 = arith.constant 2 : index
    %c0_113 = arith.constant 0 : index
    %c0_114 = arith.constant 0 : index
    %157 = vector.load %arg2[%c2_111, %c2_112, %c0_113, %c0_114] : memref<4x9x8x256xf32, #tpu.memory_space<vmem>>, vector<1x1x8x256xf32>
    %158 = vector.shape_cast %157 : vector<1x1x8x256xf32> to vector<8x256xf32>
    %c15_i32_115 = arith.constant 15 : i32
    %159 = tpu.dynamic_rotate %143 by %c15_i32_115 dim 1 : vector<8x256xf32>, i32 -> vector<8x256xf32>
    %160 = arith.mulf %159, %158 : vector<8x256xf32>
    %161 = arith.addf %156, %160 : vector<8x256xf32>
    %c2_116 = arith.constant 2 : index
    %c3_117 = arith.constant 3 : index
    %c0_118 = arith.constant 0 : index
    %c0_119 = arith.constant 0 : index
    %162 = vector.load %arg2[%c2_116, %c3_117, %c0_118, %c0_119] : memref<4x9x8x256xf32, #tpu.memory_space<vmem>>, vector<1x1x8x256xf32>
    %163 = vector.shape_cast %162 : vector<1x1x8x256xf32> to vector<8x256xf32>
    %c1_i32_120 = arith.constant 1 : i32
    %164 = tpu.dynamic_rotate %143 by %c1_i32_120 dim 1 : vector<8x256xf32>, i32 -> vector<8x256xf32>
    %165 = arith.mulf %164, %163 : vector<8x256xf32>
    %166 = arith.addf %161, %165 : vector<8x256xf32>
    %c2_121 = arith.constant 2 : index
    %c5_122 = arith.constant 5 : index
    %c0_123 = arith.constant 0 : index
    %c0_124 = arith.constant 0 : index
    %167 = vector.load %arg2[%c2_121, %c5_122, %c0_123, %c0_124] : memref<4x9x8x256xf32, #tpu.memory_space<vmem>>, vector<1x1x8x256xf32>
    %168 = vector.shape_cast %167 : vector<1x1x8x256xf32> to vector<8x256xf32>
    %c255_i32_125 = arith.constant 255 : i32
    %169 = tpu.dynamic_rotate %143 by %c255_i32_125 dim 1 : vector<8x256xf32>, i32 -> vector<8x256xf32>
    %170 = arith.mulf %169, %168 : vector<8x256xf32>
    %171 = arith.addf %166, %170 : vector<8x256xf32>
    %c2_126 = arith.constant 2 : index
    %c6_127 = arith.constant 6 : index
    %c0_128 = arith.constant 0 : index
    %c0_129 = arith.constant 0 : index
    %172 = vector.load %arg2[%c2_126, %c6_127, %c0_128, %c0_129] : memref<4x9x8x256xf32, #tpu.memory_space<vmem>>, vector<1x1x8x256xf32>
    %173 = vector.shape_cast %172 : vector<1x1x8x256xf32> to vector<8x256xf32>
    %c241_i32_130 = arith.constant 241 : i32
    %174 = tpu.dynamic_rotate %143 by %c241_i32_130 dim 1 : vector<8x256xf32>, i32 -> vector<8x256xf32>
    %175 = arith.mulf %174, %173 : vector<8x256xf32>
    %176 = arith.addf %171, %175 : vector<8x256xf32>
    %c2_131 = arith.constant 2 : index
    %c7_132 = arith.constant 7 : index
    %c0_133 = arith.constant 0 : index
    %c0_134 = arith.constant 0 : index
    %177 = vector.load %arg2[%c2_131, %c7_132, %c0_133, %c0_134] : memref<4x9x8x256xf32, #tpu.memory_space<vmem>>, vector<1x1x8x256xf32>
    %178 = vector.shape_cast %177 : vector<1x1x8x256xf32> to vector<8x256xf32>
    %c240_i32_135 = arith.constant 240 : i32
    %179 = tpu.dynamic_rotate %143 by %c240_i32_135 dim 1 : vector<8x256xf32>, i32 -> vector<8x256xf32>
    %180 = arith.mulf %179, %178 : vector<8x256xf32>
    %181 = arith.addf %176, %180 : vector<8x256xf32>
    %c2_136 = arith.constant 2 : index
    %c8_137 = arith.constant 8 : index
    %c0_138 = arith.constant 0 : index
    %c0_139 = arith.constant 0 : index
    %182 = vector.load %arg2[%c2_136, %c8_137, %c0_138, %c0_139] : memref<4x9x8x256xf32, #tpu.memory_space<vmem>>, vector<1x1x8x256xf32>
    %183 = vector.shape_cast %182 : vector<1x1x8x256xf32> to vector<8x256xf32>
    %c239_i32_140 = arith.constant 239 : i32
    %184 = tpu.dynamic_rotate %143 by %c239_i32_140 dim 1 : vector<8x256xf32>, i32 -> vector<8x256xf32>
    %185 = arith.mulf %184, %183 : vector<8x256xf32>
    %186 = arith.addf %181, %185 : vector<8x256xf32>
    %c2_141 = arith.constant 2 : index
    %c0_142 = arith.constant 0 : index
    %c0_143 = arith.constant 0 : index
    %187 = vector.load %arg3[%c2_141, %c0_142, %c0_143] : memref<4x8x8xf32, #tpu.memory_space<vmem>>, vector<1x8x8xf32>
    %188 = vector.shape_cast %187 : vector<1x8x8xf32> to vector<8x8xf32>
    %cst_144 = arith.constant dense<0.000000e+00> : vector<8x256xf32>
    %189 = tpu.matmul %188, %186, %cst_144 {dimension_numbers = #tpu.dot_dimension_numbers<[1], [0], [0], [1], [0, 0, 1, 1], [], []>, precision = #tpu.contract_precision<fp32>} : vector<8x8xf32>, vector<8x256xf32>, vector<8x256xf32> -> vector<8x256xf32>
    %cst_145 = arith.constant dense<0.000000e+00> : vector<8xf32>
    %190 = vector.multi_reduction <add>, %189, %cst_145 [1] : vector<8x256xf32> to vector<8xf32>
    %191 = vector.shape_cast %190 : vector<8xf32> to vector<8x1xf32>
    %cst_146 = arith.constant 2.560000e+02 : f32
    %192 = vector.broadcast %cst_146 : f32 to vector<8x1xf32>
    %193 = arith.divf %191, %192 : vector<8x1xf32>
    %194 = arith.mulf %189, %189 : vector<8x256xf32>
    %cst_147 = arith.constant dense<0.000000e+00> : vector<8xf32>
    %195 = vector.multi_reduction <add>, %194, %cst_147 [1] : vector<8x256xf32> to vector<8xf32>
    %196 = vector.shape_cast %195 : vector<8xf32> to vector<8x1xf32>
    %cst_148 = arith.constant 2.560000e+02 : f32
    %197 = vector.broadcast %cst_148 : f32 to vector<8x1xf32>
    %198 = arith.divf %196, %197 : vector<8x1xf32>
    %199 = arith.mulf %193, %193 : vector<8x1xf32>
    %200 = arith.subf %198, %199 : vector<8x1xf32>
    %cst_149 = arith.constant 0.000000e+00 : f32
    %201 = vector.broadcast %cst_149 : f32 to vector<8x1xf32>
    %202 = arith.maximumf %200, %201 : vector<8x1xf32>
    %203 = vector.broadcast %193 : vector<8x1xf32> to vector<8x256xf32>
    %204 = arith.subf %189, %203 : vector<8x256xf32>
    %cst_150 = arith.constant 9.99999974E-6 : f32
    %205 = vector.broadcast %cst_150 : f32 to vector<8x1xf32>
    %206 = arith.addf %202, %205 : vector<8x1xf32>
    %207 = math.rsqrt %206 : vector<8x1xf32>
    %208 = vector.broadcast %207 : vector<8x1xf32> to vector<8x256xf32>
    %209 = arith.mulf %204, %208 : vector<8x256xf32>
    %cst_151 = arith.constant 0.000000e+00 : f32
    %210 = vector.broadcast %cst_151 : f32 to vector<8x256xf32>
    %211 = arith.cmpf ogt, %209, %210 : vector<8x256xf32>
    %cst_152 = arith.constant 0.00999999977 : f32
    %212 = vector.broadcast %cst_152 : f32 to vector<8x256xf32>
    %213 = arith.mulf %212, %209 : vector<8x256xf32>
    %214 = arith.select %211, %209, %213 : vector<8x256xi1>, vector<8x256xf32>
    %c3_153 = arith.constant 3 : index
    %c4_154 = arith.constant 4 : index
    %c0_155 = arith.constant 0 : index
    %c0_156 = arith.constant 0 : index
    %215 = vector.load %arg2[%c3_153, %c4_154, %c0_155, %c0_156] : memref<4x9x8x256xf32, #tpu.memory_space<vmem>>, vector<1x1x8x256xf32>
    %216 = vector.shape_cast %215 : vector<1x1x8x256xf32> to vector<8x256xf32>
    %217 = arith.mulf %214, %216 : vector<8x256xf32>
    %c3_157 = arith.constant 3 : index
    %c0_158 = arith.constant 0 : index
    %c0_159 = arith.constant 0 : index
    %c0_160 = arith.constant 0 : index
    %218 = vector.load %arg2[%c3_157, %c0_158, %c0_159, %c0_160] : memref<4x9x8x256xf32, #tpu.memory_space<vmem>>, vector<1x1x8x256xf32>
    %219 = vector.shape_cast %218 : vector<1x1x8x256xf32> to vector<8x256xf32>
    %c17_i32_161 = arith.constant 17 : i32
    %220 = tpu.dynamic_rotate %214 by %c17_i32_161 dim 1 : vector<8x256xf32>, i32 -> vector<8x256xf32>
    %221 = arith.mulf %220, %219 : vector<8x256xf32>
    %222 = arith.addf %217, %221 : vector<8x256xf32>
    %c3_162 = arith.constant 3 : index
    %c1_163 = arith.constant 1 : index
    %c0_164 = arith.constant 0 : index
    %c0_165 = arith.constant 0 : index
    %223 = vector.load %arg2[%c3_162, %c1_163, %c0_164, %c0_165] : memref<4x9x8x256xf32, #tpu.memory_space<vmem>>, vector<1x1x8x256xf32>
    %224 = vector.shape_cast %223 : vector<1x1x8x256xf32> to vector<8x256xf32>
    %c16_i32_166 = arith.constant 16 : i32
    %225 = tpu.dynamic_rotate %214 by %c16_i32_166 dim 1 : vector<8x256xf32>, i32 -> vector<8x256xf32>
    %226 = arith.mulf %225, %224 : vector<8x256xf32>
    %227 = arith.addf %222, %226 : vector<8x256xf32>
    %c3_167 = arith.constant 3 : index
    %c2_168 = arith.constant 2 : index
    %c0_169 = arith.constant 0 : index
    %c0_170 = arith.constant 0 : index
    %228 = vector.load %arg2[%c3_167, %c2_168, %c0_169, %c0_170] : memref<4x9x8x256xf32, #tpu.memory_space<vmem>>, vector<1x1x8x256xf32>
    %229 = vector.shape_cast %228 : vector<1x1x8x256xf32> to vector<8x256xf32>
    %c15_i32_171 = arith.constant 15 : i32
    %230 = tpu.dynamic_rotate %214 by %c15_i32_171 dim 1 : vector<8x256xf32>, i32 -> vector<8x256xf32>
    %231 = arith.mulf %230, %229 : vector<8x256xf32>
    %232 = arith.addf %227, %231 : vector<8x256xf32>
    %c3_172 = arith.constant 3 : index
    %c3_173 = arith.constant 3 : index
    %c0_174 = arith.constant 0 : index
    %c0_175 = arith.constant 0 : index
    %233 = vector.load %arg2[%c3_172, %c3_173, %c0_174, %c0_175] : memref<4x9x8x256xf32, #tpu.memory_space<vmem>>, vector<1x1x8x256xf32>
    %234 = vector.shape_cast %233 : vector<1x1x8x256xf32> to vector<8x256xf32>
    %c1_i32_176 = arith.constant 1 : i32
    %235 = tpu.dynamic_rotate %214 by %c1_i32_176 dim 1 : vector<8x256xf32>, i32 -> vector<8x256xf32>
    %236 = arith.mulf %235, %234 : vector<8x256xf32>
    %237 = arith.addf %232, %236 : vector<8x256xf32>
    %c3_177 = arith.constant 3 : index
    %c5_178 = arith.constant 5 : index
    %c0_179 = arith.constant 0 : index
    %c0_180 = arith.constant 0 : index
    %238 = vector.load %arg2[%c3_177, %c5_178, %c0_179, %c0_180] : memref<4x9x8x256xf32, #tpu.memory_space<vmem>>, vector<1x1x8x256xf32>
    %239 = vector.shape_cast %238 : vector<1x1x8x256xf32> to vector<8x256xf32>
    %c255_i32_181 = arith.constant 255 : i32
    %240 = tpu.dynamic_rotate %214 by %c255_i32_181 dim 1 : vector<8x256xf32>, i32 -> vector<8x256xf32>
    %241 = arith.mulf %240, %239 : vector<8x256xf32>
    %242 = arith.addf %237, %241 : vector<8x256xf32>
    %c3_182 = arith.constant 3 : index
    %c6_183 = arith.constant 6 : index
    %c0_184 = arith.constant 0 : index
    %c0_185 = arith.constant 0 : index
    %243 = vector.load %arg2[%c3_182, %c6_183, %c0_184, %c0_185] : memref<4x9x8x256xf32, #tpu.memory_space<vmem>>, vector<1x1x8x256xf32>
    %244 = vector.shape_cast %243 : vector<1x1x8x256xf32> to vector<8x256xf32>
    %c241_i32_186 = arith.constant 241 : i32
    %245 = tpu.dynamic_rotate %214 by %c241_i32_186 dim 1 : vector<8x256xf32>, i32 -> vector<8x256xf32>
    %246 = arith.mulf %245, %244 : vector<8x256xf32>
    %247 = arith.addf %242, %246 : vector<8x256xf32>
    %c3_187 = arith.constant 3 : index
    %c7_188 = arith.constant 7 : index
    %c0_189 = arith.constant 0 : index
    %c0_190 = arith.constant 0 : index
    %248 = vector.load %arg2[%c3_187, %c7_188, %c0_189, %c0_190] : memref<4x9x8x256xf32, #tpu.memory_space<vmem>>, vector<1x1x8x256xf32>
    %249 = vector.shape_cast %248 : vector<1x1x8x256xf32> to vector<8x256xf32>
    %c240_i32_191 = arith.constant 240 : i32
    %250 = tpu.dynamic_rotate %214 by %c240_i32_191 dim 1 : vector<8x256xf32>, i32 -> vector<8x256xf32>
    %251 = arith.mulf %250, %249 : vector<8x256xf32>
    %252 = arith.addf %247, %251 : vector<8x256xf32>
    %c3_192 = arith.constant 3 : index
    %c8_193 = arith.constant 8 : index
    %c0_194 = arith.constant 0 : index
    %c0_195 = arith.constant 0 : index
    %253 = vector.load %arg2[%c3_192, %c8_193, %c0_194, %c0_195] : memref<4x9x8x256xf32, #tpu.memory_space<vmem>>, vector<1x1x8x256xf32>
    %254 = vector.shape_cast %253 : vector<1x1x8x256xf32> to vector<8x256xf32>
    %c239_i32_196 = arith.constant 239 : i32
    %255 = tpu.dynamic_rotate %214 by %c239_i32_196 dim 1 : vector<8x256xf32>, i32 -> vector<8x256xf32>
    %256 = arith.mulf %255, %254 : vector<8x256xf32>
    %257 = arith.addf %252, %256 : vector<8x256xf32>
    %c3_197 = arith.constant 3 : index
    %c0_198 = arith.constant 0 : index
    %c0_199 = arith.constant 0 : index
    %258 = vector.load %arg3[%c3_197, %c0_198, %c0_199] : memref<4x8x8xf32, #tpu.memory_space<vmem>>, vector<1x8x8xf32>
    %259 = vector.shape_cast %258 : vector<1x8x8xf32> to vector<8x8xf32>
    %cst_200 = arith.constant dense<0.000000e+00> : vector<8x256xf32>
    %260 = tpu.matmul %259, %257, %cst_200 {dimension_numbers = #tpu.dot_dimension_numbers<[1], [0], [0], [1], [0, 0, 1, 1], [], []>, precision = #tpu.contract_precision<fp32>} : vector<8x8xf32>, vector<8x256xf32>, vector<8x256xf32> -> vector<8x256xf32>
    %cst_201 = arith.constant dense<0.000000e+00> : vector<8xf32>
    %261 = vector.multi_reduction <add>, %260, %cst_201 [1] : vector<8x256xf32> to vector<8xf32>
    %262 = vector.shape_cast %261 : vector<8xf32> to vector<8x1xf32>
    %cst_202 = arith.constant 2.560000e+02 : f32
    %263 = vector.broadcast %cst_202 : f32 to vector<8x1xf32>
    %264 = arith.divf %262, %263 : vector<8x1xf32>
    %265 = arith.mulf %260, %260 : vector<8x256xf32>
    %cst_203 = arith.constant dense<0.000000e+00> : vector<8xf32>
    %266 = vector.multi_reduction <add>, %265, %cst_203 [1] : vector<8x256xf32> to vector<8xf32>
    %267 = vector.shape_cast %266 : vector<8xf32> to vector<8x1xf32>
    %cst_204 = arith.constant 2.560000e+02 : f32
    %268 = vector.broadcast %cst_204 : f32 to vector<8x1xf32>
    %269 = arith.divf %267, %268 : vector<8x1xf32>
    %270 = arith.mulf %264, %264 : vector<8x1xf32>
    %271 = arith.subf %269, %270 : vector<8x1xf32>
    %cst_205 = arith.constant 0.000000e+00 : f32
    %272 = vector.broadcast %cst_205 : f32 to vector<8x1xf32>
    %273 = arith.maximumf %271, %272 : vector<8x1xf32>
    %274 = vector.broadcast %264 : vector<8x1xf32> to vector<8x256xf32>
    %275 = arith.subf %260, %274 : vector<8x256xf32>
    %cst_206 = arith.constant 9.99999974E-6 : f32
    %276 = vector.broadcast %cst_206 : f32 to vector<8x1xf32>
    %277 = arith.addf %273, %276 : vector<8x1xf32>
    %278 = math.rsqrt %277 : vector<8x1xf32>
    %279 = vector.broadcast %278 : vector<8x1xf32> to vector<8x256xf32>
    %280 = arith.mulf %275, %279 : vector<8x256xf32>
    %cst_207 = arith.constant 0.000000e+00 : f32
    %281 = vector.broadcast %cst_207 : f32 to vector<8x256xf32>
    %282 = arith.cmpf ogt, %280, %281 : vector<8x256xf32>
    %cst_208 = arith.constant 0.00999999977 : f32
    %283 = vector.broadcast %cst_208 : f32 to vector<8x256xf32>
    %284 = arith.mulf %283, %280 : vector<8x256xf32>
    %285 = arith.select %282, %280, %284 : vector<8x256xi1>, vector<8x256xf32>
    %c0_209 = arith.constant 0 : index
    %c0_210 = arith.constant 0 : index
    %c0_211 = arith.constant 0 : index
    %286 = vector.load %arg4[%c0_209, %c0_210, %c0_211] : memref<1x8x256xf32, #tpu.memory_space<vmem>>, vector<1x8x256xf32>
    %287 = vector.shape_cast %286 : vector<1x8x256xf32> to vector<8x256xf32>
    %288 = vector.shape_cast %285 : vector<8x256xf32> to vector<1x8x256xf32>
    tpu.vector_store %arg4[%c0_209, %c0_210, %c0_211], %288 {strides = array<i32>} : memref<1x8x256xf32, #tpu.memory_space<vmem>>, vector<1x8x256xf32>,
    return
  }
  func.func @transform_0(%arg0: i32) -> (i32, i32, i32) {
    %c0_i32 = arith.constant 0 : i32
    %c0_i32_0 = arith.constant 0 : i32
    %c0_i32_1 = arith.constant 0 : i32
    return %arg0, %c0_i32, %c0_i32_0 : i32, i32, i32
  }
  func.func @transform_1(%arg0: i32) -> (i32, i32, i32, i32) {
    %c0_i32 = arith.constant 0 : i32
    %c0_i32_0 = arith.constant 0 : i32
    %c0_i32_1 = arith.constant 0 : i32
    %c0_i32_2 = arith.constant 0 : i32
    %c0_i32_3 = arith.constant 0 : i32
    return %c0_i32, %c0_i32_0, %c0_i32_1, %c0_i32_2 : i32, i32, i32, i32
  }
  func.func @transform_2(%arg0: i32) -> (i32, i32, i32) {
    %c0_i32 = arith.constant 0 : i32
    %c0_i32_0 = arith.constant 0 : i32
    %c0_i32_1 = arith.constant 0 : i32
    %c0_i32_2 = arith.constant 0 : i32
    return %c0_i32, %c0_i32_0, %c0_i32_1 : i32, i32, i32
  }
  func.func @transform_3(%arg0: i32) -> (i32, i32, i32) {
    %c0_i32 = arith.constant 0 : i32
    %c0_i32_0 = arith.constant 0 : i32
    %c0_i32_1 = arith.constant 0 : i32
    return %arg0, %c0_i32, %c0_i32_0 : i32, i32, i32
  }
}

</mosaic_0001>

<llo_original>
// kernel: sparse_proj_layer.1
$region0: #{sparse_proj_layer.1}
  #allocation0 [shape = 'u32[]', space=smem, size = 0x4, offset = 0x4, fixed_abs, tag = 'smem constant byte address 0x4 - core index']
  #allocation1 [shape = 'u32[72,128]{1,0:T(1,128)}', space=vmem, size = 0x9000, scoped, tag = 'internal scratch']
  %s0 = inlined_call_operand.vmem [shape: f32[2,8,256], index: 0, kind: input, shape index: {}]
  %s1 = inlined_call_operand.vmem [shape: f32[4,9,8,256], index: 1, kind: input, shape index: {}]
  %s2 = inlined_call_operand.vmem [shape: f32[4,8,8], index: 2, kind: input, shape index: {}]
  %s3 = inlined_call_operand.vmem [shape: f32[2,8,256], index: 3, kind: output, shape index: {}]
  %s4 = sld [smem:[#allocation0]]
  $region45: #{sparse_proj_layer.1} parent=0
    _
  %s6 = ssub.s32 1, %s4
  %s7 = scalar_select 0, %s6, %s4
  loop: start=0, step=1, limit=4
  $region2: #{sparse_proj_layer.1} parent=0 // loop_pre_header
    _
  $region3: #{sparse_proj_layer.1} parent=0 // loop_header
    %s9 = sphi 0, %s13
    %p10 = scmp.ge.s32.totalorder %s9, 4
    %s19 = sphi 0, %s21
    %s22 = sphi 0, %s19
    %s23 = sphi 0, %s22
    %s39 = sphi 0, %s23
    %s43 = sphi 0, %s43
    %s45 = sphi 0, %s43
    %s46 = sphi 0, %s45
    %s60 = sphi 0, %s46
    %s64 = sphi 0, %s64
    %s66 = sphi 0, %s64
    %s67 = sphi 0, %s66
    %s81 = sphi 0, %s67
    %s87 = sphi 0, %s89
    %s90 = sphi 0, %s87
    %s91 = sphi 0, %s90
    %s107 = sphi 0, %s91
  $region4: #{sparse_proj_layer.1} parent=0 // loop_header_branch
    %12 = sbr.rel (%p10) target = $region8
  $region5: #{sparse_proj_layer.1} parent=0 // loop_body
    %s14 = ssub.s32 %s9, 1
    %s15 = ssub.s32 %s9, 2
    %s16 = sadd.s32 %s9, 1
    %s17 = ssub.s32 %s9, %s16
    %p18 = scmp.eq.s32.totalorder %s17, 0
    %s20 = sadd.s32 %s19, 1
    %s21 = scalar_select %p18, %s19, %s20
    %p24 = pneg %p18
    %p25 = scmp.eq.s32.totalorder %s9, 1
    %p26 = por %p24, %p25
    %p27 = scmp.ne.s32.totalorder %s19, %s22
    %p28 = scmp.eq.s32.totalorder %s9, 0
    %p29 = por %p27, %p28
    %p30 = scmp.ne.s32.totalorder %s19, %s22
    %p31 = scmp.eq.s32.totalorder %s14, 1
    %p32 = por %p30, %p31
    %p33 = scmp.ne.s32.totalorder %s22, %s23
    %p34 = scmp.eq.s32.totalorder %s14, 0
    %p35 = por %p33, %p34
    %p36 = scmp.ne.s32.totalorder %s22, %s23
    %p37 = scmp.eq.s32.totalorder %s15, 1
    %p38 = por %p36, %p37
    %p40 = scmp.ne.s32.totalorder %s23, %s39
    %p41 = scmp.eq.s32.totalorder %s15, 0
    %p42 = por %p40, %p41
    %s44 = sadd.s32 %s43, 1
    %p47 = scmp.eq.s32.totalorder %s9, 1
    %p48 = scmp.ne.s32.totalorder %s43, %s45
    %p49 = scmp.eq.s32.totalorder %s9, 0
    %p50 = por %p48, %p49
    %p51 = scmp.ne.s32.totalorder %s43, %s45
    %p52 = scmp.eq.s32.totalorder %s14, 1
    %p53 = por %p51, %p52
    %p54 = scmp.ne.s32.totalorder %s45, %s46
    %p55 = scmp.eq.s32.totalorder %s14, 0
    %p56 = por %p54, %p55
    %p57 = scmp.ne.s32.totalorder %s45, %s46
    %p58 = scmp.eq.s32.totalorder %s15, 1
    %p59 = por %p57, %p58
    %p61 = scmp.ne.s32.totalorder %s46, %s60
    %p62 = scmp.eq.s32.totalorder %s15, 0
    %p63 = por %p61, %p62
    %s65 = sadd.s32 %s64, 1
    %p68 = scmp.eq.s32.totalorder %s9, 1
    %p69 = scmp.ne.s32.totalorder %s64, %s66
    %p70 = scmp.eq.s32.totalorder %s9, 0
    %p71 = por %p69, %p70
    %p72 = scmp.ne.s32.totalorder %s64, %s66
    %p73 = scmp.eq.s32.totalorder %s14, 1
    %p74 = por %p72, %p73
    %p75 = scmp.ne.s32.totalorder %s66, %s67
    %p76 = scmp.eq.s32.totalorder %s14, 0
    %p77 = por %p75, %p76
    %p78 = scmp.ne.s32.totalorder %s66, %s67
    %p79 = scmp.eq.s32.totalorder %s15, 1
    %p80 = por %p78, %p79
    %p82 = scmp.ne.s32.totalorder %s67, %s81
    %p83 = scmp.eq.s32.totalorder %s15, 0
    %p84 = por %p82, %p83
    %s85 = ssub.s32 %s9, %s16
    %p86 = scmp.eq.s32.totalorder %s85, 0
    %s88 = sadd.s32 %s87, 1
    %s89 = scalar_select %p86, %s87, %s88
    %p92 = pneg %p86
    %p93 = scmp.eq.s32.totalorder %s9, 1
    %p94 = por %p92, %p93
    %p95 = scmp.ne.s32.totalorder %s87, %s90
    %p96 = scmp.eq.s32.totalorder %s9, 0
    %p97 = por %p95, %p96
    %p98 = scmp.ne.s32.totalorder %s87, %s90
    %p99 = scmp.eq.s32.totalorder %s14, 1
    %p100 = por %p98, %p99
    %p101 = scmp.ne.s32.totalorder %s90, %s91
    %p102 = scmp.eq.s32.totalorder %s14, 0
    %p103 = por %p101, %p102
    %p104 = scmp.ne.s32.totalorder %s90, %s91
    %p105 = scmp.eq.s32.totalorder %s15, 1
    %p106 = por %p104, %p105
    %p108 = scmp.ne.s32.totalorder %s91, %s107
    %p109 = scmp.eq.s32.totalorder %s15, 0
    %p110 = por %p108, %p109
    %p111 = scmp.le.s32.totalorder 1, %s9
    %p112 = scmp.lt.s32.totalorder %s9, 3
    %p113 = pnand %p111, %p112
    %p114 = pneg %p113
    // Predicated region
    $region9: #{sparse_proj_layer.1} parent=5 // pred_check
      _
    $region10: #{sparse_proj_layer.1} parent=5 // pred_check_branch
      %116 = sbr.rel (%p113) target = $region12
    $region11: #{sparse_proj_layer.1} parent=5 // pred_region
      %s117 = ssub.s32 %s9, 1
      // Predicated region
      $region13: #{sparse_proj_layer.1} parent=11 // pred_check
        %p118 = pneg %p56
      $region14: #{sparse_proj_layer.1} parent=11 // pred_check_branch
        %120 = sbr.rel (%p118) target = $region16
      $region15: #{sparse_proj_layer.1} parent=11 // pred_region
        _
      $region16: #{sparse_proj_layer.1} parent=11 // pred_fallthru
        _
      // Predicated region
      $region17: #{sparse_proj_layer.1} parent=11 // pred_check
        %p121 = pneg %p77
      $region18: #{sparse_proj_layer.1} parent=11 // pred_check_branch
        %123 = sbr.rel (%p121) target = $region20
      $region19: #{sparse_proj_layer.1} parent=11 // pred_region
        _
      $region20: #{sparse_proj_layer.1} parent=11 // pred_fallthru
        _
    $region12: #{sparse_proj_layer.1} parent=5 // pred_fallthru
      _
    %p124 = scmp.lt.s32.totalorder %s9, 2
    // Predicated region
    $region21: #{sparse_proj_layer.1} parent=5 // pred_check
      %p125 = pneg %p124
    $region22: #{sparse_proj_layer.1} parent=5 // pred_check_branch
      %127 = sbr.rel (%p125) target = $region24
    $region23: #{sparse_proj_layer.1} parent=5 // pred_region
      // Predicated region
      $region25: #{sparse_proj_layer.1} parent=23 // pred_check
        %p128 = pneg %p29
      $region26: #{sparse_proj_layer.1} parent=23 // pred_check_branch
        %130 = sbr.rel (%p128) target = $region28
      $region27: #{sparse_proj_layer.1} parent=23 // pred_region
        %p131 = scmp.lt.s32.totalorder %s9, 1
        %s132 = scalar_select %p131, %s9, 1
        %s133 = smul.addr %s132, 2
        %s134 = smul.addr %s133, 8
        %s135 = scalar_lea.vmem %s0, %s134
      $region28: #{sparse_proj_layer.1} parent=23 // pred_fallthru
        _
    $region24: #{sparse_proj_layer.1} parent=5 // pred_fallthru
      _
    %p136 = scmp.le.s32.totalorder 1, %s9
    %p137 = scmp.lt.s32.totalorder %s9, 3
    %p138 = pnand %p136, %p137
    %p139 = pneg %p138
    // Predicated region
    $region29: #{sparse_proj_layer.1} parent=5 // pred_check
      _
    $region30: #{sparse_proj_layer.1} parent=5 // pred_check_branch
      %141 = sbr.rel (%p138) target = $region32
    $region31: #{sparse_proj_layer.1} parent=5 // pred_region
      %s142 = ssub.s32 %s9, 1
      %p143 = scmp.lt.s32.totalorder %s14, 1
      %s144 = scalar_select %p143, %s14, 1
      %s145 = smul.addr %s144, 2
      %s146 = smul.addr %s145, 8
      %s147 = scalar_lea.vmem %s0, %s146
      %p148 = pneg %p35
      %p149 = pneg %p32
      %p150 = pneg %p56
      %p151 = pneg %p53
      %p152 = pneg %p77
      %p153 = pneg %p74
      %p154 = pneg %p103
      %p155 = pneg %p100
      %p156 = scmp.lt.s32.totalorder %s14, 1
      %s157 = scalar_select %p156, %s14, 1
      %s158 = smul.addr %s157, 2
      %s159 = smul.addr %s158, 8
      %s160 = scalar_lea.vmem %s3, %s159
      %p161 = scmp.lt.s32.totalorder %s14, 1
      %s162 = scalar_select %p161, %s14, 1
      %s163 = smul.addr %s162, 2
      %s164 = smul.addr %s163, 8
      %s165 = scalar_lea.vmem %s0, %s164
      %p166 = scmp.lt.s32.totalorder %s14, 1
      %s167 = scalar_select %p166, %s14, 1
      %s168 = smul.addr %s167, 2
      %s169 = smul.addr %s168, 8
      %s170 = scalar_lea.vmem %s3, %s169
      %v171 = vld [vmem:[%s165] sm:$0xff]
      %v172 = vld [vmem:[%s165 + $0x8] sm:$0xff]
      %s173 = scalar_lea.vmem %s1, 64
      %v174 = vld [vmem:[%s173] sm:$0xff]
      %v175 = vld [vmem:[%s173 + $0x8] sm:$0xff]
      %v176 = vmul.f32 %v171, %v174
      %v177 = vmul.f32 %v172, %v175
      %v178 = vld [vmem:[%s1] sm:$0xff]
      %v179 = vld [vmem:[%s1 + $0x8] sm:$0xff]
      %180 = vrot.lane.b32.xlu0 %v171, 17
      %v181 = vpop.permute.xlu0 %180
      %182 = vrot.lane.b32.xlu0 %v172, 17
      %v183 = vpop.permute.xlu0 %182
      %v184 = vlaneseq
      %v185 = vand.u32 %v184, 127
      %vm186 = vcmp.lt.s32.totalorder %v185, 17
      %v187 = vsel %vm186, %v181, %v183
      %v188 = vsel %vm186, %v183, %v181
      %v189 = vmul.f32 %v188, %v178
      %v190 = vmul.f32 %v187, %v179
      %v191 = vadd.f32 %v176, %v189
      %v192 = vadd.f32 %v177, %v190
      %s193 = scalar_lea.vmem %s1, 16
      %v194 = vld [vmem:[%s193] sm:$0xff]
      %v195 = vld [vmem:[%s193 + $0x8] sm:$0xff]
      %196 = vrot.lane.b32.xlu0 %v171, 16
      %v197 = vpop.permute.xlu0 %196
      %198 = vrot.lane.b32.xlu0 %v172, 16
      %v199 = vpop.permute.xlu0 %198
      %vm200 = vcmp.lt.s32.totalorder %v185, 16
      %v201 = vsel %vm200, %v197, %v199
      %v202 = vsel %vm200, %v199, %v197
      %v203 = vmul.f32 %v202, %v194
      %v204 = vmul.f32 %v201, %v195
      %v205 = vadd.f32 %v191, %v203
      %v206 = vadd.f32 %v192, %v204
      %s207 = scalar_lea.vmem %s1, 32
      %v208 = vld [vmem:[%s207] sm:$0xff]
      %v209 = vld [vmem:[%s207 + $0x8] sm:$0xff]
      %210 = vrot.lane.b32.xlu0 %v171, 15
      %v211 = vpop.permute.xlu0 %210
      %212 = vrot.lane.b32.xlu0 %v172, 15
      %v213 = vpop.permute.xlu0 %212
      %vm214 = vcmp.lt.s32.totalorder %v185, 15
      %v215 = vsel %vm214, %v211, %v213
      %v216 = vsel %vm214, %v213, %v211
      %v217 = vmul.f32 %v216, %v208
      %v218 = vmul.f32 %v215, %v209
      %v219 = vadd.f32 %v205, %v217
      %v220 = vadd.f32 %v206, %v218
      %s221 = scalar_lea.vmem %s1, 48
      %v222 = vld [vmem:[%s221] sm:$0xff]
      %v223 = vld [vmem:[%s221 + $0x8] sm:$0xff]
      %224 = vrot.lane.b32.xlu0 %v171, 1
      %v225 = vpop.permute.xlu0 %224
      %226 = vrot.lane.b32.xlu0 %v172, 1
      %v227 = vpop.permute.xlu0 %226
      %vm228 = vcmp.lt.s32.totalorder %v185, 1
      %v229 = vsel %vm228, %v225, %v227
      %v230 = vsel %vm228, %v227, %v225
      %v231 = vmul.f32 %v230, %v222
      %v232 = vmul.f32 %v229, %v223
      %v233 = vadd.f32 %v219, %v231
      %v234 = vadd.f32 %v220, %v232
      %s235 = scalar_lea.vmem %s1, 80
      %v236 = vld [vmem:[%s235] sm:$0xff]
      %v237 = vld [vmem:[%s235 + $0x8] sm:$0xff]
      %238 = vrot.lane.b32.xlu0 %v171, 127
      %v239 = vpop.permute.xlu0 %238
      %240 = vrot.lane.b32.xlu0 %v172, 127
      %v241 = vpop.permute.xlu0 %240
      %vm242 = vcmp.lt.s32.totalorder %v185, 127
      %v243 = vsel %vm242, %v239, %v241
      %v244 = vsel %vm242, %v241, %v239
      %v245 = vmul.f32 %v243, %v236
      %v246 = vmul.f32 %v244, %v237
      %v247 = vadd.f32 %v233, %v245
      %v248 = vadd.f32 %v234, %v246
      %s249 = scalar_lea.vmem %s1, 96
      %v250 = vld [vmem:[%s249] sm:$0xff]
      %v251 = vld [vmem:[%s249 + $0x8] sm:$0xff]
      %252 = vrot.lane.b32.xlu0 %v171, 113
      %v253 = vpop.permute.xlu0 %252
      %254 = vrot.lane.b32.xlu0 %v172, 113
      %v255 = vpop.permute.xlu0 %254
      %vm256 = vcmp.lt.s32.totalorder %v185, 113
      %v257 = vsel %vm256, %v253, %v255
      %v258 = vsel %vm256, %v255, %v253
      %v259 = vmul.f32 %v257, %v250
      %v260 = vmul.f32 %v258, %v251
      %v261 = vadd.f32 %v247, %v259
      %v262 = vadd.f32 %v248, %v260
      %s263 = scalar_lea.vmem %s1, 112
      %v264 = vld [vmem:[%s263] sm:$0xff]
      %v265 = vld [vmem:[%s263 + $0x8] sm:$0xff]
      %266 = vrot.lane.b32.xlu0 %v171, 112
      %v267 = vpop.permute.xlu0 %266
      %268 = vrot.lane.b32.xlu0 %v172, 112
      %v269 = vpop.permute.xlu0 %268
      %vm270 = vcmp.lt.s32.totalorder %v185, 112
      %v271 = vsel %vm270, %v267, %v269
      %v272 = vsel %vm270, %v269, %v267
      %v273 = vmul.f32 %v271, %v264
      %v274 = vmul.f32 %v272, %v265
      %v275 = vadd.f32 %v261, %v273
      %v276 = vadd.f32 %v262, %v274
      %s277 = scalar_lea.vmem %s1, 128
      %v278 = vld [vmem:[%s277] sm:$0xff]
      %v279 = vld [vmem:[%s277 + $0x8] sm:$0xff]
      %280 = vrot.lane.b32.xlu0 %v171, 111
      %v281 = vpop.permute.xlu0 %280
      %282 = vrot.lane.b32.xlu0 %v172, 111
      %v283 = vpop.permute.xlu0 %282
      %vm284 = vcmp.lt.s32.totalorder %v185, 111
      %v285 = vsel %vm284, %v281, %v283
      %v286 = vsel %vm284, %v283, %v281
      %v287 = vmul.f32 %v285, %v278
      %v288 = vmul.f32 %v286, %v279
      %v289 = vadd.f32 %v275, %v287
      %v290 = vadd.f32 %v276, %v288
      %v291 = vld [vmem:[%s2] sm:$0xff]
      %vm292 = vcmask 64512
      %v294 = vsel %vm292, %v291, 0
      %296 = vmatpush.msra.mxu0 0.0
      %297 = vmatpush.msra.mxu0 0.0
      %298 = vmatpush.msra.mxu0 0.0
      %299 = vmatpush.msra.mxu0 0.0
      %300 = vmatpush.msra.mxu0 0.0
      %301 = vmatpush.msra.mxu0 0.0
      %302 = vmatpush.msra.mxu0 0.0
      %303 = vmatpush.msra.mxu0 0.0
      %304 = vmatpush.msra.mxu0 0.0
      %305 = vmatpush.msra.mxu0 0.0
      %306 = vmatpush.msra.mxu0 0.0
      %307 = vmatpush.msra.mxu0 0.0
      %308 = vmatpush.msra.mxu0 0.0
      %309 = vmatpush.msra.mxu0 0.0
      %310 = vmatpush.msra.mxu0 0.0
      %v311 = vand.u32 %v289, 4294901760
      %312 = vmatpush.msra.mxu0 %v311
      %v313 = vand.u32 %v294, 4294901760
      %v314 = vsub.f32 %v294, %v313
      %v315 = vand.u32 %v314, 4294901760
      %v316 = vsub.f32 %v314, %v315
      %v317 = vand.u32 %v316, 4294901760
      %318 = vmatmul.f32.gmra.mxu0 %v317
      %v319 = vpop.f32.mrf.mxu0
      %v320 = vadd.f32 0.0, %v319
      %321 = vdwg.mxu0
      %322 = vmatpush.msra.mxu0 0.0
      %323 = vmatpush.msra.mxu0 0.0
      %324 = vmatpush.msra.mxu0 0.0
      %325 = vmatpush.msra.mxu0 0.0
      %326 = vmatpush.msra.mxu0 0.0
      %327 = vmatpush.msra.mxu0 0.0
      %328 = vmatpush.msra.mxu0 0.0
      %329 = vmatpush.msra.mxu0 0.0
      %330 = vmatpush.msra.mxu0 0.0
      %331 = vmatpush.msra.mxu0 0.0
      %332 = vmatpush.msra.mxu0 0.0
      %333 = vmatpush.msra.mxu0 0.0
      %334 = vmatpush.msra.mxu0 0.0
      %335 = vmatpush.msra.mxu0 0.0
      %336 = vmatpush.msra.mxu0 0.0
      %v337 = vand.u32 %v289, 4294901760
      %v338 = vsub.f32 %v289, %v337
      %v339 = vand.u32 %v338, 4294901760
      %v340 = vsub.f32 %v338, %v339
      %v341 = vand.u32 %v340, 4294901760
      %342 = vmatpush.msra.mxu0 %v341
      %v343 = vand.u32 %v294, 4294901760
      %344 = vmatmul.f32.gmra.mxu0 %v343
      %v345 = vpop.f32.mrf.mxu0
      %v346 = vadd.f32 %v320, %v345
      %347 = vdwg.mxu0
      %348 = vmatpush.msra.mxu0 0.0
      %349 = vmatpush.msra.mxu0 0.0
      %350 = vmatpush.msra.mxu0 0.0
      %351 = vmatpush.msra.mxu0 0.0
      %352 = vmatpush.msra.mxu0 0.0
      %353 = vmatpush.msra.mxu0 0.0
      %354 = vmatpush.msra.mxu0 0.0
      %355 = vmatpush.msra.mxu0 0.0
      %356 = vmatpush.msra.mxu0 0.0
      %357 = vmatpush.msra.mxu0 0.0
      %358 = vmatpush.msra.mxu0 0.0
      %359 = vmatpush.msra.mxu0 0.0
      %360 = vmatpush.msra.mxu0 0.0
      %361 = vmatpush.msra.mxu0 0.0
      %362 = vmatpush.msra.mxu0 0.0
      %v363 = vand.u32 %v289, 4294901760
      %v364 = vsub.f32 %v289, %v363
      %365 = vmatpush.msra.mxu0 %v364
      %v366 = vand.u32 %v294, 4294901760
      %v367 = vsub.f32 %v294, %v366
      %368 = vmatmul.f32.gmra.mxu0 %v367
      %v369 = vpop.f32.mrf.mxu0
      %v370 = vadd.f32 %v346, %v369
      %371 = vdwg.mxu0
      %372 = vmatpush.msra.mxu0 0.0
      %373 = vmatpush.msra.mxu0 0.0
      %374 = vmatpush.msra.mxu0 0.0
      %375 = vmatpush.msra.mxu0 0.0
      %376 = vmatpush.msra.mxu0 0.0
      %377 = vmatpush.msra.mxu0 0.0
      %378 = vmatpush.msra.mxu0 0.0
      %379 = vmatpush.msra.mxu0 0.0
      %380 = vmatpush.msra.mxu0 0.0
      %381 = vmatpush.msra.mxu0 0.0
      %382 = vmatpush.msra.mxu0 0.0
      %383 = vmatpush.msra.mxu0 0.0
      %384 = vmatpush.msra.mxu0 0.0
      %385 = vmatpush.msra.mxu0 0.0
      %386 = vmatpush.msra.mxu0 0.0
      %v387 = vand.u32 %v289, 4294901760
      %388 = vmatpush.msra.mxu0 %v387
      %v389 = vand.u32 %v294, 4294901760
      %v390 = vsub.f32 %v294, %v389
      %v391 = vand.u32 %v390, 4294901760
      %392 = vmatmul.f32.gmra.mxu0 %v391
      %v393 = vpop.f32.mrf.mxu0
      %v394 = vadd.f32 %v370, %v393
      %395 = vdwg.mxu0
      %396 = vmatpush.msra.mxu0 0.0
      %397 = vmatpush.msra.mxu0 0.0
      %398 = vmatpush.msra.mxu0 0.0
      %399 = vmatpush.msra.mxu0 0.0
      %400 = vmatpush.msra.mxu0 0.0
      %401 = vmatpush.msra.mxu0 0.0
      %402 = vmatpush.msra.mxu0 0.0
      %403 = vmatpush.msra.mxu0 0.0
      %404 = vmatpush.msra.mxu0 0.0
      %405 = vmatpush.msra.mxu0 0.0
      %406 = vmatpush.msra.mxu0 0.0
      %407 = vmatpush.msra.mxu0 0.0
      %408 = vmatpush.msra.mxu0 0.0
      %409 = vmatpush.msra.mxu0 0.0
      %410 = vmatpush.msra.mxu0 0.0
      %v411 = vand.u32 %v289, 4294901760
      %v412 = vsub.f32 %v289, %v411
      %v413 = vand.u32 %v412, 4294901760
      %414 = vmatpush.msra.mxu0 %v413
      %v415 = vand.u32 %v294, 4294901760
      %416 = vmatmul.f32.gmra.mxu0 %v415
      %v417 = vpop.f32.mrf.mxu0
      %v418 = vadd.f32 %v394, %v417
      %419 = vdwg.mxu0
      %420 = vmatpush.msra.mxu0 0.0
      %421 = vmatpush.msra.mxu0 0.0
      %422 = vmatpush.msra.mxu0 0.0
      %423 = vmatpush.msra.mxu0 0.0
      %424 = vmatpush.msra.mxu0 0.0
      %425 = vmatpush.msra.mxu0 0.0
      %426 = vmatpush.msra.mxu0 0.0
      %427 = vmatpush.msra.mxu0 0.0
      %428 = vmatpush.msra.mxu0 0.0
      %429 = vmatpush.msra.mxu0 0.0
      %430 = vmatpush.msra.mxu0 0.0
      %431 = vmatpush.msra.mxu0 0.0
      %432 = vmatpush.msra.mxu0 0.0
      %433 = vmatpush.msra.mxu0 0.0
      %434 = vmatpush.msra.mxu0 0.0
      %v435 = vand.u32 %v289, 4294901760
      %436 = vmatpush.msra.mxu0 %v435
      %v437 = vand.u32 %v294, 4294901760
      %438 = vmatmul.f32.gmra.mxu0 %v437
      %v439 = vpop.f32.mrf.mxu0
      %v440 = vadd.f32 %v418, %v439
      %441 = vdwg.mxu0
      %442 = vmatpush.msra.mxu0 0.0
      %443 = vmatpush.msra.mxu0 0.0
      %444 = vmatpush.msra.mxu0 0.0
      %445 = vmatpush.msra.mxu0 0.0
      %446 = vmatpush.msra.mxu0 0.0
      %447 = vmatpush.msra.mxu0 0.0
      %448 = vmatpush.msra.mxu0 0.0
      %449 = vmatpush.msra.mxu0 0.0
      %450 = vmatpush.msra.mxu0 0.0
      %451 = vmatpush.msra.mxu0 0.0
      %452 = vmatpush.msra.mxu0 0.0
      %453 = vmatpush.msra.mxu0 0.0
      %454 = vmatpush.msra.mxu0 0.0
      %455 = vmatpush.msra.mxu0 0.0
      %456 = vmatpush.msra.mxu0 0.0
      %v457 = vand.u32 %v290, 4294901760
      %458 = vmatpush.msra.mxu0 %v457
      %v459 = vand.u32 %v294, 4294901760
      %v460 = vsub.f32 %v294, %v459
      %v461 = vand.u32 %v460, 4294901760
      %v462 = vsub.f32 %v460, %v461
      %v463 = vand.u32 %v462, 4294901760
      %464 = vmatmul.f32.gmra.mxu0 %v463
      %v465 = vpop.f32.mrf.mxu0
      %v466 = vadd.f32 0.0, %v465
      %467 = vdwg.mxu0
      %468 = vmatpush.msra.mxu0 0.0
      %469 = vmatpush.msra.mxu0 0.0
      %470 = vmatpush.msra.mxu0 0.0
      %471 = vmatpush.msra.mxu0 0.0
      %472 = vmatpush.msra.mxu0 0.0
      %473 = vmatpush.msra.mxu0 0.0
      %474 = vmatpush.msra.mxu0 0.0
      %475 = vmatpush.msra.mxu0 0.0
      %476 = vmatpush.msra.mxu0 0.0
      %477 = vmatpush.msra.mxu0 0.0
      %478 = vmatpush.msra.mxu0 0.0
      %479 = vmatpush.msra.mxu0 0.0
      %480 = vmatpush.msra.mxu0 0.0
      %481 = vmatpush.msra.mxu0 0.0
      %482 = vmatpush.msra.mxu0 0.0
      %v483 = vand.u32 %v290, 4294901760
      %v484 = vsub.f32 %v290, %v483
      %v485 = vand.u32 %v484, 4294901760
      %v486 = vsub.f32 %v484, %v485
      %v487 = vand.u32 %v486, 4294901760
      %488 = vmatpush.msra.mxu0 %v487
      %v489 = vand.u32 %v294, 4294901760
      %490 = vmatmul.f32.gmra.mxu0 %v489
      %v491 = vpop.f32.mrf.mxu0
      %v492 = vadd.f32 %v466, %v491
      %493 = vdwg.mxu0
      %494 = vmatpush.msra.mxu0 0.0
      %495 = vmatpush.msra.mxu0 0.0
      %496 = vmatpush.msra.mxu0 0.0
      %497 = vmatpush.msra.mxu0 0.0
      %498 = vmatpush.msra.mxu0 0.0
      %499 = vmatpush.msra.mxu0 0.0
      %500 = vmatpush.msra.mxu0 0.0
      %501 = vmatpush.msra.mxu0 0.0
      %502 = vmatpush.msra.mxu0 0.0
      %503 = vmatpush.msra.mxu0 0.0
      %504 = vmatpush.msra.mxu0 0.0
      %505 = vmatpush.msra.mxu0 0.0
      %506 = vmatpush.msra.mxu0 0.0
      %507 = vmatpush.msra.mxu0 0.0
      %508 = vmatpush.msra.mxu0 0.0
      %v509 = vand.u32 %v290, 4294901760
      %v510 = vsub.f32 %v290, %v509
      %511 = vmatpush.msra.mxu0 %v510
      %v512 = vand.u32 %v294, 4294901760
      %v513 = vsub.f32 %v294, %v512
      %514 = vmatmul.f32.gmra.mxu0 %v513
      %v515 = vpop.f32.mrf.mxu0
      %v516 = vadd.f32 %v492, %v515
      %517 = vdwg.mxu0
      %518 = vmatpush.msra.mxu0 0.0
      %519 = vmatpush.msra.mxu0 0.0
      %520 = vmatpush.msra.mxu0 0.0
      %521 = vmatpush.msra.mxu0 0.0
      %522 = vmatpush.msra.mxu0 0.0
      %523 = vmatpush.msra.mxu0 0.0
      %524 = vmatpush.msra.mxu0 0.0
      %525 = vmatpush.msra.mxu0 0.0
      %526 = vmatpush.msra.mxu0 0.0
      %527 = vmatpush.msra.mxu0 0.0
      %528 = vmatpush.msra.mxu0 0.0
      %529 = vmatpush.msra.mxu0 0.0
      %530 = vmatpush.msra.mxu0 0.0
      %531 = vmatpush.msra.mxu0 0.0
      %532 = vmatpush.msra.mxu0 0.0
      %v533 = vand.u32 %v290, 4294901760
      %534 = vmatpush.msra.mxu0 %v533
      %v535 = vand.u32 %v294, 4294901760
      %v536 = vsub.f32 %v294, %v535
      %v537 = vand.u32 %v536, 4294901760
      %538 = vmatmul.f32.gmra.mxu0 %v537
      %v539 = vpop.f32.mrf.mxu0
      %v540 = vadd.f32 %v516, %v539
      %541 = vdwg.mxu0
      %542 = vmatpush.msra.mxu0 0.0
      %543 = vmatpush.msra.mxu0 0.0
      %544 = vmatpush.msra.mxu0 0.0
      %545 = vmatpush.msra.mxu0 0.0
      %546 = vmatpush.msra.mxu0 0.0
      %547 = vmatpush.msra.mxu0 0.0
      %548 = vmatpush.msra.mxu0 0.0
      %549 = vmatpush.msra.mxu0 0.0
      %550 = vmatpush.msra.mxu0 0.0
      %551 = vmatpush.msra.mxu0 0.0
      %552 = vmatpush.msra.mxu0 0.0
      %553 = vmatpush.msra.mxu0 0.0
      %554 = vmatpush.msra.mxu0 0.0
      %555 = vmatpush.msra.mxu0 0.0
      %556 = vmatpush.msra.mxu0 0.0
      %v557 = vand.u32 %v290, 4294901760
      %v558 = vsub.f32 %v290, %v557
      %v559 = vand.u32 %v558, 4294901760
      %560 = vmatpush.msra.mxu0 %v559
      %v561 = vand.u32 %v294, 4294901760
      %562 = vmatmul.f32.gmra.mxu0 %v561
      %v563 = vpop.f32.mrf.mxu0
      %v564 = vadd.f32 %v540, %v563
      %565 = vdwg.mxu0
      %566 = vmatpush.msra.mxu0 0.0
      %567 = vmatpush.msra.mxu0 0.0
      %568 = vmatpush.msra.mxu0 0.0
      %569 = vmatpush.msra.mxu0 0.0
      %570 = vmatpush.msra.mxu0 0.0
      %571 = vmatpush.msra.mxu0 0.0
      %572 = vmatpush.msra.mxu0 0.0
      %573 = vmatpush.msra.mxu0 0.0
      %574 = vmatpush.msra.mxu0 0.0
      %575 = vmatpush.msra.mxu0 0.0
      %576 = vmatpush.msra.mxu0 0.0
      %577 = vmatpush.msra.mxu0 0.0
      %578 = vmatpush.msra.mxu0 0.0
      %579 = vmatpush.msra.mxu0 0.0
      %580 = vmatpush.msra.mxu0 0.0
      %v581 = vand.u32 %v290, 4294901760
      %582 = vmatpush.msra.mxu0 %v581
      %v583 = vand.u32 %v294, 4294901760
      %584 = vmatmul.f32.gmra.mxu0 %v583
      %v585 = vpop.f32.mrf.mxu0
      %v586 = vadd.f32 %v564, %v585
      %587 = vdwg.mxu0
      %v588 = vadd.f32 %v440, %v586
      %589 = vadd.xlane.f32.xlu0 %v588
      %v590 = vpop.xlane.xlu0 %589
      %v591 = vrcp.pop 256.0
      %v592 = vmul.f32 256.0, %v591
      %v593 = vsub.f32 1.0, %v592
      %v594 = vmul.f32 %v591, %v593
      %v595 = vadd.f32 %v591, %v594
      %vm596 = vweird.f32 %v591
      %v597 = vsel %vm596, %v591, %v595
      %v598 = vmul.f32 %v590, %v597
      %v599 = vmul.f32 %v440, %v440
      %v600 = vmul.f32 %v586, %v586
      %v601 = vadd.f32 %v599, %v600
      %602 = vadd.xlane.f32.xlu0 %v601
      %v603 = vpop.xlane.xlu0 %602
      %v604 = vmul.f32 %v603, %v597
      %v605 = vmul.f32 %v598, %v598
      %v606 = vsub.f32 %v604, %v605
      %v607 = vmax.f32 %v606, 0.0
      %v608 = vsub.f32 %v440, %v598
      %v609 = vsub.f32 %v586, %v598
      %v610 = vadd.f32 %v607, 1e-05
      %v611 = vrsqrt.pop %v610
      %v612 = vmul.f32 %v611, %v610
      %v613 = vmul.f32 %v612, %v611
      %v614 = vmul.f32 0.5, %v613
      %v615 = vsub.f32 1.5, %v614
      %v616 = vmul.f32 %v611, %v615
      %vm617 = vweird.f32 %v610
      %vm618 = vweird.f32 %v611
      %vm619 = vmor %vm617, %vm618
      %v620 = vsel %vm619, %v611, %v616
      %v621 = vmul.f32 %v608, %v620
      %v622 = vmul.f32 %v609, %v620
      %vm623 = vcmp.gt.f32.partialorder %v621, 0.0
      %vm624 = vcmp.gt.f32.partialorder %v622, 0.0
      %v625 = vmul.f32 %v621, 0.01
      %v626 = vmul.f32 %v622, 0.01
      %v627 = vsel %vm623, %v621, %v625
      %v628 = vsel %vm624, %v622, %v626
      %s629 = scalar_lea.vmem %s1, 208
      %v630 = vld [vmem:[%s629] sm:$0xff]
      %v631 = vld [vmem:[%s629 + $0x8] sm:$0xff]
      %v632 = vmul.f32 %v627, %v630
      %v633 = vmul.f32 %v628, %v631
      %s634 = scalar_lea.vmem %s1, 144
      %v635 = vld [vmem:[%s634] sm:$0xff]
      %v636 = vld [vmem:[%s634 + $0x8] sm:$0xff]
      %637 = vrot.lane.b32.xlu0 %v627, 17
      %v638 = vpop.permute.xlu0 %637
      %639 = vrot.lane.b32.xlu0 %v628, 17
      %v640 = vpop.permute.xlu0 %639
      %v641 = vsel %vm186, %v638, %v640
      %v642 = vsel %vm186, %v640, %v638
      %v643 = vmul.f32 %v642, %v635
      %v644 = vmul.f32 %v641, %v636
      %v645 = vadd.f32 %v632, %v643
      %v646 = vadd.f32 %v633, %v644
      %s647 = scalar_lea.vmem %s1, 160
      %v648 = vld [vmem:[%s647] sm:$0xff]
      %v649 = vld [vmem:[%s647 + $0x8] sm:$0xff]
      %650 = vrot.lane.b32.xlu0 %v627, 16
      %v651 = vpop.permute.xlu0 %650
      %652 = vrot.lane.b32.xlu0 %v628, 16
      %v653 = vpop.permute.xlu0 %652
      %v654 = vsel %vm200, %v651, %v653
      %v655 = vsel %vm200, %v653, %v651
      %v656 = vmul.f32 %v655, %v648
      %v657 = vmul.f32 %v654, %v649
      %v658 = vadd.f32 %v645, %v656
      %v659 = vadd.f32 %v646, %v657
      %s660 = scalar_lea.vmem %s1, 176
      %v661 = vld [vmem:[%s660] sm:$0xff]
      %v662 = vld [vmem:[%s660 + $0x8] sm:$0xff]
      %663 = vrot.lane.b32.xlu0 %v627, 15
      %v664 = vpop.permute.xlu0 %663
      %665 = vrot.lane.b32.xlu0 %v628, 15
      %v666 = vpop.permute.xlu0 %665
      %v667 = vsel %vm214, %v664, %v666
      %v668 = vsel %vm214, %v666, %v664
      %v669 = vmul.f32 %v668, %v661
      %v670 = vmul.f32 %v667, %v662
      %v671 = vadd.f32 %v658, %v669
      %v672 = vadd.f32 %v659, %v670
      %s673 = scalar_lea.vmem %s1, 192
      %v674 = vld [vmem:[%s673] sm:$0xff]
      %v675 = vld [vmem:[%s673 + $0x8] sm:$0xff]
      %676 = vrot.lane.b32.xlu0 %v627, 1
      %v677 = vpop.permute.xlu0 %676
      %678 = vrot.lane.b32.xlu0 %v628, 1
      %v679 = vpop.permute.xlu0 %678
      %v680 = vsel %vm228, %v677, %v679
      %v681 = vsel %vm228, %v679, %v677
      %v682 = vmul.f32 %v681, %v674
      %v683 = vmul.f32 %v680, %v675
      %v684 = vadd.f32 %v671, %v682
      %v685 = vadd.f32 %v672, %v683
      %s686 = scalar_lea.vmem %s1, 224
      %v687 = vld [vmem:[%s686] sm:$0xff]
      %v688 = vld [vmem:[%s686 + $0x8] sm:$0xff]
      %689 = vrot.lane.b32.xlu0 %v627, 127
      %v690 = vpop.permute.xlu0 %689
      %691 = vrot.lane.b32.xlu0 %v628, 127
      %v692 = vpop.permute.xlu0 %691
      %v693 = vsel %vm242, %v690, %v692
      %v694 = vsel %vm242, %v692, %v690
      %v695 = vmul.f32 %v693, %v687
      %v696 = vmul.f32 %v694, %v688
      %v697 = vadd.f32 %v684, %v695
      %v698 = vadd.f32 %v685, %v696
      %s699 = scalar_lea.vmem %s1, 240
      %v700 = vld [vmem:[%s699] sm:$0xff]
      %v701 = vld [vmem:[%s699 + $0x8] sm:$0xff]
      %702 = vrot.lane.b32.xlu0 %v627, 113
      %v703 = vpop.permute.xlu0 %702
      %704 = vrot.lane.b32.xlu0 %v628, 113
      %v705 = vpop.permute.xlu0 %704
      %v706 = vsel %vm256, %v703, %v705
      %v707 = vsel %vm256, %v705, %v703
      %v708 = vmul.f32 %v706, %v700
      %v709 = vmul.f32 %v707, %v701
      %v710 = vadd.f32 %v697, %v708
      %v711 = vadd.f32 %v698, %v709
      %s712 = scalar_lea.vmem %s1, 256
      %v713 = vld [vmem:[%s712] sm:$0xff]
      %v714 = vld [vmem:[%s712 + $0x8] sm:$0xff]
      %715 = vrot.lane.b32.xlu0 %v627, 112
      %v716 = vpop.permute.xlu0 %715
      %717 = vrot.lane.b32.xlu0 %v628, 112
      %v718 = vpop.permute.xlu0 %717
      %v719 = vsel %vm270, %v716, %v718
      %v720 = vsel %vm270, %v718, %v716
      %v721 = vmul.f32 %v719, %v713
      %v722 = vmul.f32 %v720, %v714
      %v723 = vadd.f32 %v710, %v721
      %v724 = vadd.f32 %v711, %v722
      %s725 = scalar_lea.vmem %s1, 272
      %v726 = vld [vmem:[%s725] sm:$0xff]
      %v727 = vld [vmem:[%s725 + $0x8] sm:$0xff]
      %728 = vrot.lane.b32.xlu0 %v627, 111
      %v729 = vpop.permute.xlu0 %728
      %730 = vrot.lane.b32.xlu0 %v628, 111
      %v731 = vpop.permute.xlu0 %730
      %v732 = vsel %vm284, %v729, %v731
      %v733 = vsel %vm284, %v731, %v729
      %v734 = vmul.f32 %v732, %v726
      %v735 = vmul.f32 %v733, %v727
      %v736 = vadd.f32 %v723, %v734
      %v737 = vadd.f32 %v724, %v735
      %s738 = scalar_lea.vmem %s2, 8
      %v739 = vld [vmem:[%s738] sm:$0xff]
      %v741 = vsel %vm292, %v739, 0
      %743 = vmatpush.msra.mxu0 0.0
      %744 = vmatpush.msra.mxu0 0.0
      %745 = vmatpush.msra.mxu0 0.0
      %746 = vmatpush.msra.mxu0 0.0
      %747 = vmatpush.msra.mxu0 0.0
      %748 = vmatpush.msra.mxu0 0.0
      %749 = vmatpush.msra.mxu0 0.0
      %750 = vmatpush.msra.mxu0 0.0
      %751 = vmatpush.msra.mxu0 0.0
      %752 = vmatpush.msra.mxu0 0.0
      %753 = vmatpush.msra.mxu0 0.0
      %754 = vmatpush.msra.mxu0 0.0
      %755 = vmatpush.msra.mxu0 0.0
      %756 = vmatpush.msra.mxu0 0.0
      %757 = vmatpush.msra.mxu0 0.0
      %v758 = vand.u32 %v736, 4294901760
      %759 = vmatpush.msra.mxu0 %v758
      %v760 = vand.u32 %v741, 4294901760
      %v761 = vsub.f32 %v741, %v760
      %v762 = vand.u32 %v761, 4294901760
      %v763 = vsub.f32 %v761, %v762
      %v764 = vand.u32 %v763, 4294901760
      %765 = vmatmul.f32.gmra.mxu0 %v764
      %v766 = vpop.f32.mrf.mxu0
      %v767 = vadd.f32 0.0, %v766
      %768 = vdwg.mxu0
      %769 = vmatpush.msra.mxu0 0.0
      %770 = vmatpush.msra.mxu0 0.0
      %771 = vmatpush.msra.mxu0 0.0
      %772 = vmatpush.msra.mxu0 0.0
      %773 = vmatpush.msra.mxu0 0.0
      %774 = vmatpush.msra.mxu0 0.0
      %775 = vmatpush.msra.mxu0 0.0
      %776 = vmatpush.msra.mxu0 0.0
      %777 = vmatpush.msra.mxu0 0.0
      %778 = vmatpush.msra.mxu0 0.0
      %779 = vmatpush.msra.mxu0 0.0
      %780 = vmatpush.msra.mxu0 0.0
      %781 = vmatpush.msra.mxu0 0.0
      %782 = vmatpush.msra.mxu0 0.0
      %783 = vmatpush.msra.mxu0 0.0
      %v784 = vand.u32 %v736, 4294901760
      %v785 = vsub.f32 %v736, %v784
      %v786 = vand.u32 %v785, 4294901760
      %v787 = vsub.f32 %v785, %v786
      %v788 = vand.u32 %v787, 4294901760
      %789 = vmatpush.msra.mxu0 %v788
      %v790 = vand.u32 %v741, 4294901760
      %791 = vmatmul.f32.gmra.mxu0 %v790
      %v792 = vpop.f32.mrf.mxu0
      %v793 = vadd.f32 %v767, %v792
      %794 = vdwg.mxu0
      %795 = vmatpush.msra.mxu0 0.0
      %796 = vmatpush.msra.mxu0 0.0
      %797 = vmatpush.msra.mxu0 0.0
      %798 = vmatpush.msra.mxu0 0.0
      %799 = vmatpush.msra.mxu0 0.0
      %800 = vmatpush.msra.mxu0 0.0
      %801 = vmatpush.msra.mxu0 0.0
      %802 = vmatpush.msra.mxu0 0.0
      %803 = vmatpush.msra.mxu0 0.0
      %804 = vmatpush.msra.mxu0 0.0
      %805 = vmatpush.msra.mxu0 0.0
      %806 = vmatpush.msra.mxu0 0.0
      %807 = vmatpush.msra.mxu0 0.0
      %808 = vmatpush.msra.mxu0 0.0
      %809 = vmatpush.msra.mxu0 0.0
      %v810 = vand.u32 %v736, 4294901760
      %v811 = vsub.f32 %v736, %v810
      %812 = vmatpush.msra.mxu0 %v811
      %v813 = vand.u32 %v741, 4294901760
      %v814 = vsub.f32 %v741, %v813
      %815 = vmatmul.f32.gmra.mxu0 %v814
      %v816 = vpop.f32.mrf.mxu0
      %v817 = vadd.f32 %v793, %v816
      %818 = vdwg.mxu0
      %819 = vmatpush.msra.mxu0 0.0
      %820 = vmatpush.msra.mxu0 0.0
      %821 = vmatpush.msra.mxu0 0.0
      %822 = vmatpush.msra.mxu0 0.0
      %823 = vmatpush.msra.mxu0 0.0
      %824 = vmatpush.msra.mxu0 0.0
      %825 = vmatpush.msra.mxu0 0.0
      %826 = vmatpush.msra.mxu0 0.0
      %827 = vmatpush.msra.mxu0 0.0
      %828 = vmatpush.msra.mxu0 0.0
      %829 = vmatpush.msra.mxu0 0.0
      %830 = vmatpush.msra.mxu0 0.0
      %831 = vmatpush.msra.mxu0 0.0
      %832 = vmatpush.msra.mxu0 0.0
      %833 = vmatpush.msra.mxu0 0.0
      %v834 = vand.u32 %v736, 4294901760
      %835 = vmatpush.msra.mxu0 %v834
      %v836 = vand.u32 %v741, 4294901760
      %v837 = vsub.f32 %v741, %v836
      %v838 = vand.u32 %v837, 4294901760
      %839 = vmatmul.f32.gmra.mxu0 %v838
      %v840 = vpop.f32.mrf.mxu0
      %v841 = vadd.f32 %v817, %v840
      %842 = vdwg.mxu0
      %843 = vmatpush.msra.mxu0 0.0
      %844 = vmatpush.msra.mxu0 0.0
      %845 = vmatpush.msra.mxu0 0.0
      %846 = vmatpush.msra.mxu0 0.0
      %847 = vmatpush.msra.mxu0 0.0
      %848 = vmatpush.msra.mxu0 0.0
      %849 = vmatpush.msra.mxu0 0.0
      %850 = vmatpush.msra.mxu0 0.0
      %851 = vmatpush.msra.mxu0 0.0
      %852 = vmatpush.msra.mxu0 0.0
      %853 = vmatpush.msra.mxu0 0.0
      %854 = vmatpush.msra.mxu0 0.0
      %855 = vmatpush.msra.mxu0 0.0
      %856 = vmatpush.msra.mxu0 0.0
      %857 = vmatpush.msra.mxu0 0.0
      %v858 = vand.u32 %v736, 4294901760
      %v859 = vsub.f32 %v736, %v858
      %v860 = vand.u32 %v859, 4294901760
      %861 = vmatpush.msra.mxu0 %v860
      %v862 = vand.u32 %v741, 4294901760
      %863 = vmatmul.f32.gmra.mxu0 %v862
      %v864 = vpop.f32.mrf.mxu0
      %v865 = vadd.f32 %v841, %v864
      %866 = vdwg.mxu0
      %867 = vmatpush.msra.mxu0 0.0
      %868 = vmatpush.msra.mxu0 0.0
      %869 = vmatpush.msra.mxu0 0.0
      %870 = vmatpush.msra.mxu0 0.0
      %871 = vmatpush.msra.mxu0 0.0
      %872 = vmatpush.msra.mxu0 0.0
      %873 = vmatpush.msra.mxu0 0.0
      %874 = vmatpush.msra.mxu0 0.0
      %875 = vmatpush.msra.mxu0 0.0
      %876 = vmatpush.msra.mxu0 0.0
      %877 = vmatpush.msra.mxu0 0.0
      %878 = vmatpush.msra.mxu0 0.0
      %879 = vmatpush.msra.mxu0 0.0
      %880 = vmatpush.msra.mxu0 0.0
      %881 = vmatpush.msra.mxu0 0.0
      %v882 = vand.u32 %v736, 4294901760
      %883 = vmatpush.msra.mxu0 %v882
      %v884 = vand.u32 %v741, 4294901760
      %885 = vmatmul.f32.gmra.mxu0 %v884
      %v886 = vpop.f32.mrf.mxu0
      %v887 = vadd.f32 %v865, %v886
      %888 = vdwg.mxu0
      %889 = vmatpush.msra.mxu0 0.0
      %890 = vmatpush.msra.mxu0 0.0
      %891 = vmatpush.msra.mxu0 0.0
      %892 = vmatpush.msra.mxu0 0.0
      %893 = vmatpush.msra.mxu0 0.0
      %894 = vmatpush.msra.mxu0 0.0
      %895 = vmatpush.msra.mxu0 0.0
      %896 = vmatpush.msra.mxu0 0.0
      %897 = vmatpush.msra.mxu0 0.0
      %898 = vmatpush.msra.mxu0 0.0
      %899 = vmatpush.msra.mxu0 0.0
      %900 = vmatpush.msra.mxu0 0.0
      %901 = vmatpush.msra.mxu0 0.0
      %902 = vmatpush.msra.mxu0 0.0
      %903 = vmatpush.msra.mxu0 0.0
      %v904 = vand.u32 %v737, 4294901760
      %905 = vmatpush.msra.mxu0 %v904
      %v906 = vand.u32 %v741, 4294901760
      %v907 = vsub.f32 %v741, %v906
      %v908 = vand.u32 %v907, 4294901760
      %v909 = vsub.f32 %v907, %v908
      %v910 = vand.u32 %v909, 4294901760
      %911 = vmatmul.f32.gmra.mxu0 %v910
      %v912 = vpop.f32.mrf.mxu0
      %v913 = vadd.f32 0.0, %v912
      %914 = vdwg.mxu0
      %915 = vmatpush.msra.mxu0 0.0
      %916 = vmatpush.msra.mxu0 0.0
      %917 = vmatpush.msra.mxu0 0.0
      %918 = vmatpush.msra.mxu0 0.0
      %919 = vmatpush.msra.mxu0 0.0
      %920 = vmatpush.msra.mxu0 0.0
      %921 = vmatpush.msra.mxu0 0.0
      %922 = vmatpush.msra.mxu0 0.0
      %923 = vmatpush.msra.mxu0 0.0
      %924 = vmatpush.msra.mxu0 0.0
      %925 = vmatpush.msra.mxu0 0.0
      %926 = vmatpush.msra.mxu0 0.0
      %927 = vmatpush.msra.mxu0 0.0
      %928 = vmatpush.msra.mxu0 0.0
      %929 = vmatpush.msra.mxu0 0.0
      %v930 = vand.u32 %v737, 4294901760
      %v931 = vsub.f32 %v737, %v930
      %v932 = vand.u32 %v931, 4294901760
      %v933 = vsub.f32 %v931, %v932
      %v934 = vand.u32 %v933, 4294901760
      %935 = vmatpush.msra.mxu0 %v934
      %v936 = vand.u32 %v741, 4294901760
      %937 = vmatmul.f32.gmra.mxu0 %v936
      %v938 = vpop.f32.mrf.mxu0
      %v939 = vadd.f32 %v913, %v938
      %940 = vdwg.mxu0
      %941 = vmatpush.msra.mxu0 0.0
      %942 = vmatpush.msra.mxu0 0.0
      %943 = vmatpush.msra.mxu0 0.0
      %944 = vmatpush.msra.mxu0 0.0
      %945 = vmatpush.msra.mxu0 0.0
      %946 = vmatpush.msra.mxu0 0.0
      %947 = vmatpush.msra.mxu0 0.0
      %948 = vmatpush.msra.mxu0 0.0
      %949 = vmatpush.msra.mxu0 0.0
      %950 = vmatpush.msra.mxu0 0.0
      %951 = vmatpush.msra.mxu0 0.0
      %952 = vmatpush.msra.mxu0 0.0
      %953 = vmatpush.msra.mxu0 0.0
      %954 = vmatpush.msra.mxu0 0.0
      %955 = vmatpush.msra.mxu0 0.0
      %v956 = vand.u32 %v737, 4294901760
      %v957 = vsub.f32 %v737, %v956
      %958 = vmatpush.msra.mxu0 %v957
      %v959 = vand.u32 %v741, 4294901760
      %v960 = vsub.f32 %v741, %v959
      %961 = vmatmul.f32.gmra.mxu0 %v960
      %v962 = vpop.f32.mrf.mxu0
      %v963 = vadd.f32 %v939, %v962
      %964 = vdwg.mxu0
      %965 = vmatpush.msra.mxu0 0.0
      %966 = vmatpush.msra.mxu0 0.0
      %967 = vmatpush.msra.mxu0 0.0
      %968 = vmatpush.msra.mxu0 0.0
      %969 = vmatpush.msra.mxu0 0.0
      %970 = vmatpush.msra.mxu0 0.0
      %971 = vmatpush.msra.mxu0 0.0
      %972 = vmatpush.msra.mxu0 0.0
      %973 = vmatpush.msra.mxu0 0.0
      %974 = vmatpush.msra.mxu0 0.0
      %975 = vmatpush.msra.mxu0 0.0
      %976 = vmatpush.msra.mxu0 0.0
      %977 = vmatpush.msra.mxu0 0.0
      %978 = vmatpush.msra.mxu0 0.0
      %979 = vmatpush.msra.mxu0 0.0
      %v980 = vand.u32 %v737, 4294901760
      %981 = vmatpush.msra.mxu0 %v980
      %v982 = vand.u32 %v741, 4294901760
      %v983 = vsub.f32 %v741, %v982
      %v984 = vand.u32 %v983, 4294901760
      %985 = vmatmul.f32.gmra.mxu0 %v984
      %v986 = vpop.f32.mrf.mxu0
      %v987 = vadd.f32 %v963, %v986
      %988 = vdwg.mxu0
      %989 = vmatpush.msra.mxu0 0.0
      %990 = vmatpush.msra.mxu0 0.0
      %991 = vmatpush.msra.mxu0 0.0
      %992 = vmatpush.msra.mxu0 0.0
      %993 = vmatpush.msra.mxu0 0.0
      %994 = vmatpush.msra.mxu0 0.0
      %995 = vmatpush.msra.mxu0 0.0
      %996 = vmatpush.msra.mxu0 0.0
      %997 = vmatpush.msra.mxu0 0.0
      %998 = vmatpush.msra.mxu0 0.0
      %999 = vmatpush.msra.mxu0 0.0
      %1000 = vmatpush.msra.mxu0 0.0
      %1001 = vmatpush.msra.mxu0 0.0
      %1002 = vmatpush.msra.mxu0 0.0
      %1003 = vmatpush.msra.mxu0 0.0
      %v1004 = vand.u32 %v737, 4294901760
      %v1005 = vsub.f32 %v737, %v1004
      %v1006 = vand.u32 %v1005, 4294901760
      %1007 = vmatpush.msra.mxu0 %v1006
      %v1008 = vand.u32 %v741, 4294901760
      %1009 = vmatmul.f32.gmra.mxu0 %v1008
      %v1010 = vpop.f32.mrf.mxu0
      %v1011 = vadd.f32 %v987, %v1010
      %1012 = vdwg.mxu0
      %1013 = vmatpush.msra.mxu0 0.0
      %1014 = vmatpush.msra.mxu0 0.0
      %1015 = vmatpush.msra.mxu0 0.0
      %1016 = vmatpush.msra.mxu0 0.0
      %1017 = vmatpush.msra.mxu0 0.0
      %1018 = vmatpush.msra.mxu0 0.0
      %1019 = vmatpush.msra.mxu0 0.0
      %1020 = vmatpush.msra.mxu0 0.0
      %1021 = vmatpush.msra.mxu0 0.0
      %1022 = vmatpush.msra.mxu0 0.0
      %1023 = vmatpush.msra.mxu0 0.0
      %1024 = vmatpush.msra.mxu0 0.0
      %1025 = vmatpush.msra.mxu0 0.0
      %1026 = vmatpush.msra.mxu0 0.0
      %1027 = vmatpush.msra.mxu0 0.0
      %v1028 = vand.u32 %v737, 4294901760
      %1029 = vmatpush.msra.mxu0 %v1028
      %v1030 = vand.u32 %v741, 4294901760
      %1031 = vmatmul.f32.gmra.mxu0 %v1030
      %v1032 = vpop.f32.mrf.mxu0
      %v1033 = vadd.f32 %v1011, %v1032
      %1034 = vdwg.mxu0
      %v1035 = vadd.f32 %v887, %v1033
      %1036 = vadd.xlane.f32.xlu0 %v1035
      %v1037 = vpop.xlane.xlu0 %1036
      %v1038 = vmul.f32 %v1037, %v597
      %v1039 = vmul.f32 %v887, %v887
      %v1040 = vmul.f32 %v1033, %v1033
      %v1041 = vadd.f32 %v1039, %v1040
      %1042 = vadd.xlane.f32.xlu0 %v1041
      %v1043 = vpop.xlane.xlu0 %1042
      %v1044 = vmul.f32 %v1043, %v597
      %v1045 = vmul.f32 %v1038, %v1038
      %v1046 = vsub.f32 %v1044, %v1045
      %v1047 = vmax.f32 %v1046, 0.0
      %v1048 = vsub.f32 %v887, %v1038
      %v1049 = vsub.f32 %v1033, %v1038
      %v1050 = vadd.f32 %v1047, 1e-05
      %v1051 = vrsqrt.pop %v1050
      %v1052 = vmul.f32 %v1051, %v1050
      %v1053 = vmul.f32 %v1052, %v1051
      %v1054 = vmul.f32 0.5, %v1053
      %v1055 = vsub.f32 1.5, %v1054
      %v1056 = vmul.f32 %v1051, %v1055
      %vm1057 = vweird.f32 %v1050
      %vm1058 = vweird.f32 %v1051
      %vm1059 = vmor %vm1057, %vm1058
      %v1060 = vsel %vm1059, %v1051, %v1056
      %v1061 = vmul.f32 %v1048, %v1060
      %v1062 = vmul.f32 %v1049, %v1060
      %vm1063 = vcmp.gt.f32.partialorder %v1061, 0.0
      %vm1064 = vcmp.gt.f32.partialorder %v1062, 0.0
      %v1065 = vmul.f32 %v1061, 0.01
      %v1066 = vmul.f32 %v1062, 0.01
      %v1067 = vsel %vm1063, %v1061, %v1065
      %v1068 = vsel %vm1064, %v1062, %v1066
      %s1069 = scalar_lea.vmem %s1, 352
      %v1070 = vld [vmem:[%s1069] sm:$0xff]
      %v1071 = vld [vmem:[%s1069 + $0x8] sm:$0xff]
      %v1072 = vmul.f32 %v1067, %v1070
      %v1073 = vmul.f32 %v1068, %v1071
      %s1074 = scalar_lea.vmem %s1, 288
      %v1075 = vld [vmem:[%s1074] sm:$0xff]
      %v1076 = vld [vmem:[%s1074 + $0x8] sm:$0xff]
      %1077 = vrot.lane.b32.xlu0 %v1067, 17
      %v1078 = vpop.permute.xlu0 %1077
      %1079 = vrot.lane.b32.xlu0 %v1068, 17
      %v1080 = vpop.permute.xlu0 %1079
      %v1081 = vsel %vm186, %v1078, %v1080
      %v1082 = vsel %vm186, %v1080, %v1078
      %v1083 = vmul.f32 %v1082, %v1075
      %v1084 = vmul.f32 %v1081, %v1076
      %v1085 = vadd.f32 %v1072, %v1083
      %v1086 = vadd.f32 %v1073, %v1084
      %s1087 = scalar_lea.vmem %s1, 304
      %v1088 = vld [vmem:[%s1087] sm:$0xff]
      %v1089 = vld [vmem:[%s1087 + $0x8] sm:$0xff]
      %1090 = vrot.lane.b32.xlu0 %v1067, 16
      %v1091 = vpop.permute.xlu0 %1090
      %1092 = vrot.lane.b32.xlu0 %v1068, 16
      %v1093 = vpop.permute.xlu0 %1092
      %v1094 = vsel %vm200, %v1091, %v1093
      %v1095 = vsel %vm200, %v1093, %v1091
      %v1096 = vmul.f32 %v1095, %v1088
      %v1097 = vmul.f32 %v1094, %v1089
      %v1098 = vadd.f32 %v1085, %v1096
      %v1099 = vadd.f32 %v1086, %v1097
      %s1100 = scalar_lea.vmem %s1, 320
      %v1101 = vld [vmem:[%s1100] sm:$0xff]
      %v1102 = vld [vmem:[%s1100 + $0x8] sm:$0xff]
      %1103 = vrot.lane.b32.xlu0 %v1067, 15
      %v1104 = vpop.permute.xlu0 %1103
      %1105 = vrot.lane.b32.xlu0 %v1068, 15
      %v1106 = vpop.permute.xlu0 %1105
      %v1107 = vsel %vm214, %v1104, %v1106
      %v1108 = vsel %vm214, %v1106, %v1104
      %v1109 = vmul.f32 %v1108, %v1101
      %v1110 = vmul.f32 %v1107, %v1102
      %v1111 = vadd.f32 %v1098, %v1109
      %v1112 = vadd.f32 %v1099, %v1110
      %s1113 = scalar_lea.vmem %s1, 336
      %v1114 = vld [vmem:[%s1113] sm:$0xff]
      %v1115 = vld [vmem:[%s1113 + $0x8] sm:$0xff]
      %1116 = vrot.lane.b32.xlu0 %v1067, 1
      %v1117 = vpop.permute.xlu0 %1116
      %1118 = vrot.lane.b32.xlu0 %v1068, 1
      %v1119 = vpop.permute.xlu0 %1118
      %v1120 = vsel %vm228, %v1117, %v1119
      %v1121 = vsel %vm228, %v1119, %v1117
      %v1122 = vmul.f32 %v1121, %v1114
      %v1123 = vmul.f32 %v1120, %v1115
      %v1124 = vadd.f32 %v1111, %v1122
      %v1125 = vadd.f32 %v1112, %v1123
      %s1126 = scalar_lea.vmem %s1, 368
      %v1127 = vld [vmem:[%s1126] sm:$0xff]
      %v1128 = vld [vmem:[%s1126 + $0x8] sm:$0xff]
      %1129 = vrot.lane.b32.xlu0 %v1067, 127
      %v1130 = vpop.permute.xlu0 %1129
      %1131 = vrot.lane.b32.xlu0 %v1068, 127
      %v1132 = vpop.permute.xlu0 %1131
      %v1133 = vsel %vm242, %v1130, %v1132
      %v1134 = vsel %vm242, %v1132, %v1130
      %v1135 = vmul.f32 %v1133, %v1127
      %v1136 = vmul.f32 %v1134, %v1128
      %v1137 = vadd.f32 %v1124, %v1135
      %v1138 = vadd.f32 %v1125, %v1136
      %s1139 = scalar_lea.vmem %s1, 384
      %v1140 = vld [vmem:[%s1139] sm:$0xff]
      %v1141 = vld [vmem:[%s1139 + $0x8] sm:$0xff]
      %1142 = vrot.lane.b32.xlu0 %v1067, 113
      %v1143 = vpop.permute.xlu0 %1142
      %1144 = vrot.lane.b32.xlu0 %v1068, 113
      %v1145 = vpop.permute.xlu0 %1144
      %v1146 = vsel %vm256, %v1143, %v1145
      %v1147 = vsel %vm256, %v1145, %v1143
      %v1148 = vmul.f32 %v1146, %v1140
      %v1149 = vmul.f32 %v1147, %v1141
      %v1150 = vadd.f32 %v1137, %v1148
      %v1151 = vadd.f32 %v1138, %v1149
      %s1152 = scalar_lea.vmem %s1, 400
      %v1153 = vld [vmem:[%s1152] sm:$0xff]
      %v1154 = vld [vmem:[%s1152 + $0x8] sm:$0xff]
      %1155 = vrot.lane.b32.xlu0 %v1067, 112
      %v1156 = vpop.permute.xlu0 %1155
      %1157 = vrot.lane.b32.xlu0 %v1068, 112
      %v1158 = vpop.permute.xlu0 %1157
      %v1159 = vsel %vm270, %v1156, %v1158
      %v1160 = vsel %vm270, %v1158, %v1156
      %v1161 = vmul.f32 %v1159, %v1153
      %v1162 = vmul.f32 %v1160, %v1154
      %v1163 = vadd.f32 %v1150, %v1161
      %v1164 = vadd.f32 %v1151, %v1162
      %s1165 = scalar_lea.vmem %s1, 416
      %v1166 = vld [vmem:[%s1165] sm:$0xff]
      %v1167 = vld [vmem:[%s1165 + $0x8] sm:$0xff]
      %1168 = vrot.lane.b32.xlu0 %v1067, 111
      %v1169 = vpop.permute.xlu0 %1168
      %1170 = vrot.lane.b32.xlu0 %v1068, 111
      %v1171 = vpop.permute.xlu0 %1170
      %v1172 = vsel %vm284, %v1169, %v1171
      %v1173 = vsel %vm284, %v1171, %v1169
      %v1174 = vmul.f32 %v1172, %v1166
      %v1175 = vmul.f32 %v1173, %v1167
      %v1176 = vadd.f32 %v1163, %v1174
      %v1177 = vadd.f32 %v1164, %v1175
      %s1178 = scalar_lea.vmem %s2, 16
      %v1179 = vld [vmem:[%s1178] sm:$0xff]
      %v1181 = vsel %vm292, %v1179, 0
      %1183 = vmatpush.msra.mxu0 0.0
      %1184 = vmatpush.msra.mxu0 0.0
      %1185 = vmatpush.msra.mxu0 0.0
      %1186 = vmatpush.msra.mxu0 0.0
      %1187 = vmatpush.msra.mxu0 0.0
      %1188 = vmatpush.msra.mxu0 0.0
      %1189 = vmatpush.msra.mxu0 0.0
      %1190 = vmatpush.msra.mxu0 0.0
      %1191 = vmatpush.msra.mxu0 0.0
      %1192 = vmatpush.msra.mxu0 0.0
      %1193 = vmatpush.msra.mxu0 0.0
      %1194 = vmatpush.msra.mxu0 0.0
      %1195 = vmatpush.msra.mxu0 0.0
      %1196 = vmatpush.msra.mxu0 0.0
      %1197 = vmatpush.msra.mxu0 0.0
      %v1198 = vand.u32 %v1176, 4294901760
      %1199 = vmatpush.msra.mxu0 %v1198
      %v1200 = vand.u32 %v1181, 4294901760
      %v1201 = vsub.f32 %v1181, %v1200
      %v1202 = vand.u32 %v1201, 4294901760
      %v1203 = vsub.f32 %v1201, %v1202
      %v1204 = vand.u32 %v1203, 4294901760
      %1205 = vmatmul.f32.gmra.mxu0 %v1204
      %v1206 = vpop.f32.mrf.mxu0
      %v1207 = vadd.f32 0.0, %v1206
      %1208 = vdwg.mxu0
      %1209 = vmatpush.msra.mxu0 0.0
      %1210 = vmatpush.msra.mxu0 0.0
      %1211 = vmatpush.msra.mxu0 0.0
      %1212 = vmatpush.msra.mxu0 0.0
      %1213 = vmatpush.msra.mxu0 0.0
      %1214 = vmatpush.msra.mxu0 0.0
      %1215 = vmatpush.msra.mxu0 0.0
      %1216 = vmatpush.msra.mxu0 0.0
      %1217 = vmatpush.msra.mxu0 0.0
      %1218 = vmatpush.msra.mxu0 0.0
      %1219 = vmatpush.msra.mxu0 0.0
      %1220 = vmatpush.msra.mxu0 0.0
      %1221 = vmatpush.msra.mxu0 0.0
      %1222 = vmatpush.msra.mxu0 0.0
      %1223 = vmatpush.msra.mxu0 0.0
      %v1224 = vand.u32 %v1176, 4294901760
      %v1225 = vsub.f32 %v1176, %v1224
      %v1226 = vand.u32 %v1225, 4294901760
      %v1227 = vsub.f32 %v1225, %v1226
      %v1228 = vand.u32 %v1227, 4294901760
      %1229 = vmatpush.msra.mxu0 %v1228
      %v1230 = vand.u32 %v1181, 4294901760
      %1231 = vmatmul.f32.gmra.mxu0 %v1230
      %v1232 = vpop.f32.mrf.mxu0
      %v1233 = vadd.f32 %v1207, %v1232
      %1234 = vdwg.mxu0
      %1235 = vmatpush.msra.mxu0 0.0
      %1236 = vmatpush.msra.mxu0 0.0
      %1237 = vmatpush.msra.mxu0 0.0
      %1238 = vmatpush.msra.mxu0 0.0
      %1239 = vmatpush.msra.mxu0 0.0
      %1240 = vmatpush.msra.mxu0 0.0
      %1241 = vmatpush.msra.mxu0 0.0
      %1242 = vmatpush.msra.mxu0 0.0
      %1243 = vmatpush.msra.mxu0 0.0
      %1244 = vmatpush.msra.mxu0 0.0
      %1245 = vmatpush.msra.mxu0 0.0
      %1246 = vmatpush.msra.mxu0 0.0
      %1247 = vmatpush.msra.mxu0 0.0
      %1248 = vmatpush.msra.mxu0 0.0
      %1249 = vmatpush.msra.mxu0 0.0
      %v1250 = vand.u32 %v1176, 4294901760
      %v1251 = vsub.f32 %v1176, %v1250
      %1252 = vmatpush.msra.mxu0 %v1251
      %v1253 = vand.u32 %v1181, 4294901760
      %v1254 = vsub.f32 %v1181, %v1253
      %1255 = vmatmul.f32.gmra.mxu0 %v1254
      %v1256 = vpop.f32.mrf.mxu0
      %v1257 = vadd.f32 %v1233, %v1256
      %1258 = vdwg.mxu0
      %1259 = vmatpush.msra.mxu0 0.0
      %1260 = vmatpush.msra.mxu0 0.0
      %1261 = vmatpush.msra.mxu0 0.0
      %1262 = vmatpush.msra.mxu0 0.0
      %1263 = vmatpush.msra.mxu0 0.0
      %1264 = vmatpush.msra.mxu0 0.0
      %1265 = vmatpush.msra.mxu0 0.0
      %1266 = vmatpush.msra.mxu0 0.0
      %1267 = vmatpush.msra.mxu0 0.0
      %1268 = vmatpush.msra.mxu0 0.0
      %1269 = vmatpush.msra.mxu0 0.0
      %1270 = vmatpush.msra.mxu0 0.0
      %1271 = vmatpush.msra.mxu0 0.0
      %1272 = vmatpush.msra.mxu0 0.0
      %1273 = vmatpush.msra.mxu0 0.0
      %v1274 = vand.u32 %v1176, 4294901760
      %1275 = vmatpush.msra.mxu0 %v1274
      %v1276 = vand.u32 %v1181, 4294901760
      %v1277 = vsub.f32 %v1181, %v1276
      %v1278 = vand.u32 %v1277, 4294901760
      %1279 = vmatmul.f32.gmra.mxu0 %v1278
      %v1280 = vpop.f32.mrf.mxu0
      %v1281 = vadd.f32 %v1257, %v1280
      %1282 = vdwg.mxu0
      %1283 = vmatpush.msra.mxu0 0.0
      %1284 = vmatpush.msra.mxu0 0.0
      %1285 = vmatpush.msra.mxu0 0.0
      %1286 = vmatpush.msra.mxu0 0.0
      %1287 = vmatpush.msra.mxu0 0.0
      %1288 = vmatpush.msra.mxu0 0.0
      %1289 = vmatpush.msra.mxu0 0.0
      %1290 = vmatpush.msra.mxu0 0.0
      %1291 = vmatpush.msra.mxu0 0.0
      %1292 = vmatpush.msra.mxu0 0.0
      %1293 = vmatpush.msra.mxu0 0.0
      %1294 = vmatpush.msra.mxu0 0.0
      %1295 = vmatpush.msra.mxu0 0.0
      %1296 = vmatpush.msra.mxu0 0.0
      %1297 = vmatpush.msra.mxu0 0.0
      %v1298 = vand.u32 %v1176, 4294901760
      %v1299 = vsub.f32 %v1176, %v1298
      %v1300 = vand.u32 %v1299, 4294901760
      %1301 = vmatpush.msra.mxu0 %v1300
      %v1302 = vand.u32 %v1181, 4294901760
      %1303 = vmatmul.f32.gmra.mxu0 %v1302
      %v1304 = vpop.f32.mrf.mxu0
      %v1305 = vadd.f32 %v1281, %v1304
      %1306 = vdwg.mxu0
      %1307 = vmatpush.msra.mxu0 0.0
      %1308 = vmatpush.msra.mxu0 0.0
      %1309 = vmatpush.msra.mxu0 0.0
      %1310 = vmatpush.msra.mxu0 0.0
      %1311 = vmatpush.msra.mxu0 0.0
      %1312 = vmatpush.msra.mxu0 0.0
      %1313 = vmatpush.msra.mxu0 0.0
      %1314 = vmatpush.msra.mxu0 0.0
      %1315 = vmatpush.msra.mxu0 0.0
      %1316 = vmatpush.msra.mxu0 0.0
      %1317 = vmatpush.msra.mxu0 0.0
      %1318 = vmatpush.msra.mxu0 0.0
      %1319 = vmatpush.msra.mxu0 0.0
      %1320 = vmatpush.msra.mxu0 0.0
      %1321 = vmatpush.msra.mxu0 0.0
      %v1322 = vand.u32 %v1176, 4294901760
      %1323 = vmatpush.msra.mxu0 %v1322
      %v1324 = vand.u32 %v1181, 4294901760
      %1325 = vmatmul.f32.gmra.mxu0 %v1324
      %v1326 = vpop.f32.mrf.mxu0
      %v1327 = vadd.f32 %v1305, %v1326
      %1328 = vdwg.mxu0
      %1329 = vmatpush.msra.mxu0 0.0
      %1330 = vmatpush.msra.mxu0 0.0
      %1331 = vmatpush.msra.mxu0 0.0
      %1332 = vmatpush.msra.mxu0 0.0
      %1333 = vmatpush.msra.mxu0 0.0
      %1334 = vmatpush.msra.mxu0 0.0
      %1335 = vmatpush.msra.mxu0 0.0
      %1336 = vmatpush.msra.mxu0 0.0
      %1337 = vmatpush.msra.mxu0 0.0
      %1338 = vmatpush.msra.mxu0 0.0
      %1339 = vmatpush.msra.mxu0 0.0
      %1340 = vmatpush.msra.mxu0 0.0
      %1341 = vmatpush.msra.mxu0 0.0
      %1342 = vmatpush.msra.mxu0 0.0
      %1343 = vmatpush.msra.mxu0 0.0
      %v1344 = vand.u32 %v1177, 4294901760
      %1345 = vmatpush.msra.mxu0 %v1344
      %v1346 = vand.u32 %v1181, 4294901760
      %v1347 = vsub.f32 %v1181, %v1346
      %v1348 = vand.u32 %v1347, 4294901760
      %v1349 = vsub.f32 %v1347, %v1348
      %v1350 = vand.u32 %v1349, 4294901760
      %1351 = vmatmul.f32.gmra.mxu0 %v1350
      %v1352 = vpop.f32.mrf.mxu0
      %v1353 = vadd.f32 0.0, %v1352
      %1354 = vdwg.mxu0
      %1355 = vmatpush.msra.mxu0 0.0
      %1356 = vmatpush.msra.mxu0 0.0
      %1357 = vmatpush.msra.mxu0 0.0
      %1358 = vmatpush.msra.mxu0 0.0
      %1359 = vmatpush.msra.mxu0 0.0
      %1360 = vmatpush.msra.mxu0 0.0
      %1361 = vmatpush.msra.mxu0 0.0
      %1362 = vmatpush.msra.mxu0 0.0
      %1363 = vmatpush.msra.mxu0 0.0
      %1364 = vmatpush.msra.mxu0 0.0
      %1365 = vmatpush.msra.mxu0 0.0
      %1366 = vmatpush.msra.mxu0 0.0
      %1367 = vmatpush.msra.mxu0 0.0
      %1368 = vmatpush.msra.mxu0 0.0
      %1369 = vmatpush.msra.mxu0 0.0
      %v1370 = vand.u32 %v1177, 4294901760
      %v1371 = vsub.f32 %v1177, %v1370
      %v1372 = vand.u32 %v1371, 4294901760
      %v1373 = vsub.f32 %v1371, %v1372
      %v1374 = vand.u32 %v1373, 4294901760
      %1375 = vmatpush.msra.mxu0 %v1374
      %v1376 = vand.u32 %v1181, 4294901760
      %1377 = vmatmul.f32.gmra.mxu0 %v1376
      %v1378 = vpop.f32.mrf.mxu0
      %v1379 = vadd.f32 %v1353, %v1378
      %1380 = vdwg.mxu0
      %1381 = vmatpush.msra.mxu0 0.0
      %1382 = vmatpush.msra.mxu0 0.0
      %1383 = vmatpush.msra.mxu0 0.0
      %1384 = vmatpush.msra.mxu0 0.0
      %1385 = vmatpush.msra.mxu0 0.0
      %1386 = vmatpush.msra.mxu0 0.0
      %1387 = vmatpush.msra.mxu0 0.0
      %1388 = vmatpush.msra.mxu0 0.0
      %1389 = vmatpush.msra.mxu0 0.0
      %1390 = vmatpush.msra.mxu0 0.0
      %1391 = vmatpush.msra.mxu0 0.0
      %1392 = vmatpush.msra.mxu0 0.0
      %1393 = vmatpush.msra.mxu0 0.0
      %1394 = vmatpush.msra.mxu0 0.0
      %1395 = vmatpush.msra.mxu0 0.0
      %v1396 = vand.u32 %v1177, 4294901760
      %v1397 = vsub.f32 %v1177, %v1396
      %1398 = vmatpush.msra.mxu0 %v1397
      %v1399 = vand.u32 %v1181, 4294901760
      %v1400 = vsub.f32 %v1181, %v1399
      %1401 = vmatmul.f32.gmra.mxu0 %v1400
      %v1402 = vpop.f32.mrf.mxu0
      %v1403 = vadd.f32 %v1379, %v1402
      %1404 = vdwg.mxu0
      %1405 = vmatpush.msra.mxu0 0.0
      %1406 = vmatpush.msra.mxu0 0.0
      %1407 = vmatpush.msra.mxu0 0.0
      %1408 = vmatpush.msra.mxu0 0.0
      %1409 = vmatpush.msra.mxu0 0.0
      %1410 = vmatpush.msra.mxu0 0.0
      %1411 = vmatpush.msra.mxu0 0.0
      %1412 = vmatpush.msra.mxu0 0.0
      %1413 = vmatpush.msra.mxu0 0.0
      %1414 = vmatpush.msra.mxu0 0.0
      %1415 = vmatpush.msra.mxu0 0.0
      %1416 = vmatpush.msra.mxu0 0.0
      %1417 = vmatpush.msra.mxu0 0.0
      %1418 = vmatpush.msra.mxu0 0.0
      %1419 = vmatpush.msra.mxu0 0.0
      %v1420 = vand.u32 %v1177, 4294901760
      %1421 = vmatpush.msra.mxu0 %v1420
      %v1422 = vand.u32 %v1181, 4294901760
      %v1423 = vsub.f32 %v1181, %v1422
      %v1424 = vand.u32 %v1423, 4294901760
      %1425 = vmatmul.f32.gmra.mxu0 %v1424
      %v1426 = vpop.f32.mrf.mxu0
      %v1427 = vadd.f32 %v1403, %v1426
      %1428 = vdwg.mxu0
      %1429 = vmatpush.msra.mxu0 0.0
      %1430 = vmatpush.msra.mxu0 0.0
      %1431 = vmatpush.msra.mxu0 0.0
      %1432 = vmatpush.msra.mxu0 0.0
      %1433 = vmatpush.msra.mxu0 0.0
      %1434 = vmatpush.msra.mxu0 0.0
      %1435 = vmatpush.msra.mxu0 0.0
      %1436 = vmatpush.msra.mxu0 0.0
      %1437 = vmatpush.msra.mxu0 0.0
      %1438 = vmatpush.msra.mxu0 0.0
      %1439 = vmatpush.msra.mxu0 0.0
      %1440 = vmatpush.msra.mxu0 0.0
      %1441 = vmatpush.msra.mxu0 0.0
      %1442 = vmatpush.msra.mxu0 0.0
      %1443 = vmatpush.msra.mxu0 0.0
      %v1444 = vand.u32 %v1177, 4294901760
      %v1445 = vsub.f32 %v1177, %v1444
      %v1446 = vand.u32 %v1445, 4294901760
      %1447 = vmatpush.msra.mxu0 %v1446
      %v1448 = vand.u32 %v1181, 4294901760
      %1449 = vmatmul.f32.gmra.mxu0 %v1448
      %v1450 = vpop.f32.mrf.mxu0
      %v1451 = vadd.f32 %v1427, %v1450
      %1452 = vdwg.mxu0
      %1453 = vmatpush.msra.mxu0 0.0
      %1454 = vmatpush.msra.mxu0 0.0
      %1455 = vmatpush.msra.mxu0 0.0
      %1456 = vmatpush.msra.mxu0 0.0
      %1457 = vmatpush.msra.mxu0 0.0
      %1458 = vmatpush.msra.mxu0 0.0
      %1459 = vmatpush.msra.mxu0 0.0
      %1460 = vmatpush.msra.mxu0 0.0
      %1461 = vmatpush.msra.mxu0 0.0
      %1462 = vmatpush.msra.mxu0 0.0
      %1463 = vmatpush.msra.mxu0 0.0
      %1464 = vmatpush.msra.mxu0 0.0
      %1465 = vmatpush.msra.mxu0 0.0
      %1466 = vmatpush.msra.mxu0 0.0
      %1467 = vmatpush.msra.mxu0 0.0
      %v1468 = vand.u32 %v1177, 4294901760
      %1469 = vmatpush.msra.mxu0 %v1468
      %v1470 = vand.u32 %v1181, 4294901760
      %1471 = vmatmul.f32.gmra.mxu0 %v1470
      %v1472 = vpop.f32.mrf.mxu0
      %v1473 = vadd.f32 %v1451, %v1472
      %1474 = vdwg.mxu0
      %v1475 = vadd.f32 %v1327, %v1473
      %1476 = vadd.xlane.f32.xlu0 %v1475
      %v1477 = vpop.xlane.xlu0 %1476
      %v1478 = vmul.f32 %v1477, %v597
      %v1479 = vmul.f32 %v1327, %v1327
      %v1480 = vmul.f32 %v1473, %v1473
      %v1481 = vadd.f32 %v1479, %v1480
      %1482 = vadd.xlane.f32.xlu0 %v1481
      %v1483 = vpop.xlane.xlu0 %1482
      %v1484 = vmul.f32 %v1483, %v597
      %v1485 = vmul.f32 %v1478, %v1478
      %v1486 = vsub.f32 %v1484, %v1485
      %v1487 = vmax.f32 %v1486, 0.0
      %v1488 = vsub.f32 %v1327, %v1478
      %v1489 = vsub.f32 %v1473, %v1478
      %v1490 = vadd.f32 %v1487, 1e-05
      %v1491 = vrsqrt.pop %v1490
      %v1492 = vmul.f32 %v1491, %v1490
      %v1493 = vmul.f32 %v1492, %v1491
      %v1494 = vmul.f32 0.5, %v1493
      %v1495 = vsub.f32 1.5, %v1494
      %v1496 = vmul.f32 %v1491, %v1495
      %vm1497 = vweird.f32 %v1490
      %vm1498 = vweird.f32 %v1491
      %vm1499 = vmor %vm1497, %vm1498
      %v1500 = vsel %vm1499, %v1491, %v1496
      %v1501 = vmul.f32 %v1488, %v1500
      %v1502 = vmul.f32 %v1489, %v1500
      %vm1503 = vcmp.gt.f32.partialorder %v1501, 0.0
      %vm1504 = vcmp.gt.f32.partialorder %v1502, 0.0
      %v1505 = vmul.f32 %v1501, 0.01
      %v1506 = vmul.f32 %v1502, 0.01
      %v1507 = vsel %vm1503, %v1501, %v1505
      %v1508 = vsel %vm1504, %v1502, %v1506
      %s1509 = scalar_lea.vmem %s1, 496
      %v1510 = vld [vmem:[%s1509] sm:$0xff]
      %v1511 = vld [vmem:[%s1509 + $0x8] sm:$0xff]
      %v1512 = vmul.f32 %v1507, %v1510
      %v1513 = vmul.f32 %v1508, %v1511
      %s1514 = scalar_lea.vmem %s1, 432
      %v1515 = vld [vmem:[%s1514] sm:$0xff]
      %v1516 = vld [vmem:[%s1514 + $0x8] sm:$0xff]
      %1517 = vrot.lane.b32.xlu0 %v1507, 17
      %v1518 = vpop.permute.xlu0 %1517
      %1519 = vrot.lane.b32.xlu0 %v1508, 17
      %v1520 = vpop.permute.xlu0 %1519
      %v1521 = vsel %vm186, %v1518, %v1520
      %v1522 = vsel %vm186, %v1520, %v1518
      %v1523 = vmul.f32 %v1522, %v1515
      %v1524 = vmul.f32 %v1521, %v1516
      %v1525 = vadd.f32 %v1512, %v1523
      %v1526 = vadd.f32 %v1513, %v1524
      %s1527 = scalar_lea.vmem %s1, 448
      %v1528 = vld [vmem:[%s1527] sm:$0xff]
      %v1529 = vld [vmem:[%s1527 + $0x8] sm:$0xff]
      %1530 = vrot.lane.b32.xlu0 %v1507, 16
      %v1531 = vpop.permute.xlu0 %1530
      %1532 = vrot.lane.b32.xlu0 %v1508, 16
      %v1533 = vpop.permute.xlu0 %1532
      %v1534 = vsel %vm200, %v1531, %v1533
      %v1535 = vsel %vm200, %v1533, %v1531
      %v1536 = vmul.f32 %v1535, %v1528
      %v1537 = vmul.f32 %v1534, %v1529
      %v1538 = vadd.f32 %v1525, %v1536
      %v1539 = vadd.f32 %v1526, %v1537
      %s1540 = scalar_lea.vmem %s1, 464
      %v1541 = vld [vmem:[%s1540] sm:$0xff]
      %v1542 = vld [vmem:[%s1540 + $0x8] sm:$0xff]
      %1543 = vrot.lane.b32.xlu0 %v1507, 15
      %v1544 = vpop.permute.xlu0 %1543
      %1545 = vrot.lane.b32.xlu0 %v1508, 15
      %v1546 = vpop.permute.xlu0 %1545
      %v1547 = vsel %vm214, %v1544, %v1546
      %v1548 = vsel %vm214, %v1546, %v1544
      %v1549 = vmul.f32 %v1548, %v1541
      %v1550 = vmul.f32 %v1547, %v1542
      %v1551 = vadd.f32 %v1538, %v1549
      %v1552 = vadd.f32 %v1539, %v1550
      %s1553 = scalar_lea.vmem %s1, 480
      %v1554 = vld [vmem:[%s1553] sm:$0xff]
      %v1555 = vld [vmem:[%s1553 + $0x8] sm:$0xff]
      %1556 = vrot.lane.b32.xlu0 %v1507, 1
      %v1557 = vpop.permute.xlu0 %1556
      %1558 = vrot.lane.b32.xlu0 %v1508, 1
      %v1559 = vpop.permute.xlu0 %1558
      %v1560 = vsel %vm228, %v1557, %v1559
      %v1561 = vsel %vm228, %v1559, %v1557
      %v1562 = vmul.f32 %v1561, %v1554
      %v1563 = vmul.f32 %v1560, %v1555
      %v1564 = vadd.f32 %v1551, %v1562
      %v1565 = vadd.f32 %v1552, %v1563
      %s1566 = scalar_lea.vmem %s1, 512
      %v1567 = vld [vmem:[%s1566] sm:$0xff]
      %v1568 = vld [vmem:[%s1566 + $0x8] sm:$0xff]
      %1569 = vrot.lane.b32.xlu0 %v1507, 127
      %v1570 = vpop.permute.xlu0 %1569
      %1571 = vrot.lane.b32.xlu0 %v1508, 127
      %v1572 = vpop.permute.xlu0 %1571
      %v1573 = vsel %vm242, %v1570, %v1572
      %v1574 = vsel %vm242, %v1572, %v1570
      %v1575 = vmul.f32 %v1573, %v1567
      %v1576 = vmul.f32 %v1574, %v1568
      %v1577 = vadd.f32 %v1564, %v1575
      %v1578 = vadd.f32 %v1565, %v1576
      %s1579 = scalar_lea.vmem %s1, 528
      %v1580 = vld [vmem:[%s1579] sm:$0xff]
      %v1581 = vld [vmem:[%s1579 + $0x8] sm:$0xff]
      %1582 = vrot.lane.b32.xlu0 %v1507, 113
      %v1583 = vpop.permute.xlu0 %1582
      %1584 = vrot.lane.b32.xlu0 %v1508, 113
      %v1585 = vpop.permute.xlu0 %1584
      %v1586 = vsel %vm256, %v1583, %v1585
      %v1587 = vsel %vm256, %v1585, %v1583
      %v1588 = vmul.f32 %v1586, %v1580
      %v1589 = vmul.f32 %v1587, %v1581
      %v1590 = vadd.f32 %v1577, %v1588
      %v1591 = vadd.f32 %v1578, %v1589
      %s1592 = scalar_lea.vmem %s1, 544
      %v1593 = vld [vmem:[%s1592] sm:$0xff]
      %v1594 = vld [vmem:[%s1592 + $0x8] sm:$0xff]
      %1595 = vrot.lane.b32.xlu0 %v1507, 112
      %v1596 = vpop.permute.xlu0 %1595
      %1597 = vrot.lane.b32.xlu0 %v1508, 112
      %v1598 = vpop.permute.xlu0 %1597
      %v1599 = vsel %vm270, %v1596, %v1598
      %v1600 = vsel %vm270, %v1598, %v1596
      %v1601 = vmul.f32 %v1599, %v1593
      %v1602 = vmul.f32 %v1600, %v1594
      %v1603 = vadd.f32 %v1590, %v1601
      %v1604 = vadd.f32 %v1591, %v1602
      %s1605 = scalar_lea.vmem %s1, 560
      %v1606 = vld [vmem:[%s1605] sm:$0xff]
      %v1607 = vld [vmem:[%s1605 + $0x8] sm:$0xff]
      %1608 = vrot.lane.b32.xlu0 %v1507, 111
      %v1609 = vpop.permute.xlu0 %1608
      %1610 = vrot.lane.b32.xlu0 %v1508, 111
      %v1611 = vpop.permute.xlu0 %1610
      %v1612 = vsel %vm284, %v1609, %v1611
      %v1613 = vsel %vm284, %v1611, %v1609
      %v1614 = vmul.f32 %v1612, %v1606
      %v1615 = vmul.f32 %v1613, %v1607
      %v1616 = vadd.f32 %v1603, %v1614
      %v1617 = vadd.f32 %v1604, %v1615
      %s1618 = scalar_lea.vmem %s2, 24
      %v1619 = vld [vmem:[%s1618] sm:$0xff]
      %v1621 = vsel %vm292, %v1619, 0
      %1623 = vmatpush.msra.mxu0 0.0
      %1624 = vmatpush.msra.mxu0 0.0
      %1625 = vmatpush.msra.mxu0 0.0
      %1626 = vmatpush.msra.mxu0 0.0
      %1627 = vmatpush.msra.mxu0 0.0
      %1628 = vmatpush.msra.mxu0 0.0
      %1629 = vmatpush.msra.mxu0 0.0
      %1630 = vmatpush.msra.mxu0 0.0
      %1631 = vmatpush.msra.mxu0 0.0
      %1632 = vmatpush.msra.mxu0 0.0
      %1633 = vmatpush.msra.mxu0 0.0
      %1634 = vmatpush.msra.mxu0 0.0
      %1635 = vmatpush.msra.mxu0 0.0
      %1636 = vmatpush.msra.mxu0 0.0
      %1637 = vmatpush.msra.mxu0 0.0
      %v1638 = vand.u32 %v1616, 4294901760
      %1639 = vmatpush.msra.mxu0 %v1638
      %v1640 = vand.u32 %v1621, 4294901760
      %v1641 = vsub.f32 %v1621, %v1640
      %v1642 = vand.u32 %v1641, 4294901760
      %v1643 = vsub.f32 %v1641, %v1642
      %v1644 = vand.u32 %v1643, 4294901760
      %1645 = vmatmul.f32.gmra.mxu0 %v1644
      %v1646 = vpop.f32.mrf.mxu0
      %v1647 = vadd.f32 0.0, %v1646
      %1648 = vdwg.mxu0
      %1649 = vmatpush.msra.mxu0 0.0
      %1650 = vmatpush.msra.mxu0 0.0
      %1651 = vmatpush.msra.mxu0 0.0
      %1652 = vmatpush.msra.mxu0 0.0
      %1653 = vmatpush.msra.mxu0 0.0
      %1654 = vmatpush.msra.mxu0 0.0
      %1655 = vmatpush.msra.mxu0 0.0
      %1656 = vmatpush.msra.mxu0 0.0
      %1657 = vmatpush.msra.mxu0 0.0
      %1658 = vmatpush.msra.mxu0 0.0
      %1659 = vmatpush.msra.mxu0 0.0
      %1660 = vmatpush.msra.mxu0 0.0
      %1661 = vmatpush.msra.mxu0 0.0
      %1662 = vmatpush.msra.mxu0 0.0
      %1663 = vmatpush.msra.mxu0 0.0
      %v1664 = vand.u32 %v1616, 4294901760
      %v1665 = vsub.f32 %v1616, %v1664
      %v1666 = vand.u32 %v1665, 4294901760
      %v1667 = vsub.f32 %v1665, %v1666
      %v1668 = vand.u32 %v1667, 4294901760
      %1669 = vmatpush.msra.mxu0 %v1668
      %v1670 = vand.u32 %v1621, 4294901760
      %1671 = vmatmul.f32.gmra.mxu0 %v1670
      %v1672 = vpop.f32.mrf.mxu0
      %v1673 = vadd.f32 %v1647, %v1672
      %1674 = vdwg.mxu0
      %1675 = vmatpush.msra.mxu0 0.0
      %1676 = vmatpush.msra.mxu0 0.0
      %1677 = vmatpush.msra.mxu0 0.0
      %1678 = vmatpush.msra.mxu0 0.0
      %1679 = vmatpush.msra.mxu0 0.0
      %1680 = vmatpush.msra.mxu0 0.0
      %1681 = vmatpush.msra.mxu0 0.0
      %1682 = vmatpush.msra.mxu0 0.0
      %1683 = vmatpush.msra.mxu0 0.0
      %1684 = vmatpush.msra.mxu0 0.0
      %1685 = vmatpush.msra.mxu0 0.0
      %1686 = vmatpush.msra.mxu0 0.0
      %1687 = vmatpush.msra.mxu0 0.0
      %1688 = vmatpush.msra.mxu0 0.0
      %1689 = vmatpush.msra.mxu0 0.0
      %v1690 = vand.u32 %v1616, 4294901760
      %v1691 = vsub.f32 %v1616, %v1690
      %1692 = vmatpush.msra.mxu0 %v1691
      %v1693 = vand.u32 %v1621, 4294901760
      %v1694 = vsub.f32 %v1621, %v1693
      %1695 = vmatmul.f32.gmra.mxu0 %v1694
      %v1696 = vpop.f32.mrf.mxu0
      %v1697 = vadd.f32 %v1673, %v1696
      %1698 = vdwg.mxu0
      %1699 = vmatpush.msra.mxu0 0.0
      %1700 = vmatpush.msra.mxu0 0.0
      %1701 = vmatpush.msra.mxu0 0.0
      %1702 = vmatpush.msra.mxu0 0.0
      %1703 = vmatpush.msra.mxu0 0.0
      %1704 = vmatpush.msra.mxu0 0.0
      %1705 = vmatpush.msra.mxu0 0.0
      %1706 = vmatpush.msra.mxu0 0.0
      %1707 = vmatpush.msra.mxu0 0.0
      %1708 = vmatpush.msra.mxu0 0.0
      %1709 = vmatpush.msra.mxu0 0.0
      %1710 = vmatpush.msra.mxu0 0.0
      %1711 = vmatpush.msra.mxu0 0.0
      %1712 = vmatpush.msra.mxu0 0.0
      %1713 = vmatpush.msra.mxu0 0.0
      %v1714 = vand.u32 %v1616, 4294901760
      %1715 = vmatpush.msra.mxu0 %v1714
      %v1716 = vand.u32 %v1621, 4294901760
      %v1717 = vsub.f32 %v1621, %v1716
      %v1718 = vand.u32 %v1717, 4294901760
      %1719 = vmatmul.f32.gmra.mxu0 %v1718
      %v1720 = vpop.f32.mrf.mxu0
      %v1721 = vadd.f32 %v1697, %v1720
      %1722 = vdwg.mxu0
      %1723 = vmatpush.msra.mxu0 0.0
      %1724 = vmatpush.msra.mxu0 0.0
      %1725 = vmatpush.msra.mxu0 0.0
      %1726 = vmatpush.msra.mxu0 0.0
      %1727 = vmatpush.msra.mxu0 0.0
      %1728 = vmatpush.msra.mxu0 0.0
      %1729 = vmatpush.msra.mxu0 0.0
      %1730 = vmatpush.msra.mxu0 0.0
      %1731 = vmatpush.msra.mxu0 0.0
      %1732 = vmatpush.msra.mxu0 0.0
      %1733 = vmatpush.msra.mxu0 0.0
      %1734 = vmatpush.msra.mxu0 0.0
      %1735 = vmatpush.msra.mxu0 0.0
      %1736 = vmatpush.msra.mxu0 0.0
      %1737 = vmatpush.msra.mxu0 0.0
      %v1738 = vand.u32 %v1616, 4294901760
      %v1739 = vsub.f32 %v1616, %v1738
      %v1740 = vand.u32 %v1739, 4294901760
      %1741 = vmatpush.msra.mxu0 %v1740
      %v1742 = vand.u32 %v1621, 4294901760
      %1743 = vmatmul.f32.gmra.mxu0 %v1742
      %v1744 = vpop.f32.mrf.mxu0
      %v1745 = vadd.f32 %v1721, %v1744
      %1746 = vdwg.mxu0
      %1747 = vmatpush.msra.mxu0 0.0
      %1748 = vmatpush.msra.mxu0 0.0
      %1749 = vmatpush.msra.mxu0 0.0
      %1750 = vmatpush.msra.mxu0 0.0
      %1751 = vmatpush.msra.mxu0 0.0
      %1752 = vmatpush.msra.mxu0 0.0
      %1753 = vmatpush.msra.mxu0 0.0
      %1754 = vmatpush.msra.mxu0 0.0
      %1755 = vmatpush.msra.mxu0 0.0
      %1756 = vmatpush.msra.mxu0 0.0
      %1757 = vmatpush.msra.mxu0 0.0
      %1758 = vmatpush.msra.mxu0 0.0
      %1759 = vmatpush.msra.mxu0 0.0
      %1760 = vmatpush.msra.mxu0 0.0
      %1761 = vmatpush.msra.mxu0 0.0
      %v1762 = vand.u32 %v1616, 4294901760
      %1763 = vmatpush.msra.mxu0 %v1762
      %v1764 = vand.u32 %v1621, 4294901760
      %1765 = vmatmul.f32.gmra.mxu0 %v1764
      %v1766 = vpop.f32.mrf.mxu0
      %v1767 = vadd.f32 %v1745, %v1766
      %1768 = vdwg.mxu0
      %1769 = vmatpush.msra.mxu0 0.0
      %1770 = vmatpush.msra.mxu0 0.0
      %1771 = vmatpush.msra.mxu0 0.0
      %1772 = vmatpush.msra.mxu0 0.0
      %1773 = vmatpush.msra.mxu0 0.0
      %1774 = vmatpush.msra.mxu0 0.0
      %1775 = vmatpush.msra.mxu0 0.0
      %1776 = vmatpush.msra.mxu0 0.0
      %1777 = vmatpush.msra.mxu0 0.0
      %1778 = vmatpush.msra.mxu0 0.0
      %1779 = vmatpush.msra.mxu0 0.0
      %1780 = vmatpush.msra.mxu0 0.0
      %1781 = vmatpush.msra.mxu0 0.0
      %1782 = vmatpush.msra.mxu0 0.0
      %1783 = vmatpush.msra.mxu0 0.0
      %v1784 = vand.u32 %v1617, 4294901760
      %1785 = vmatpush.msra.mxu0 %v1784
      %v1786 = vand.u32 %v1621, 4294901760
      %v1787 = vsub.f32 %v1621, %v1786
      %v1788 = vand.u32 %v1787, 4294901760
      %v1789 = vsub.f32 %v1787, %v1788
      %v1790 = vand.u32 %v1789, 4294901760
      %1791 = vmatmul.f32.gmra.mxu0 %v1790
      %v1792 = vpop.f32.mrf.mxu0
      %v1793 = vadd.f32 0.0, %v1792
      %1794 = vdwg.mxu0
      %1795 = vmatpush.msra.mxu0 0.0
      %1796 = vmatpush.msra.mxu0 0.0
      %1797 = vmatpush.msra.mxu0 0.0
      %1798 = vmatpush.msra.mxu0 0.0
      %1799 = vmatpush.msra.mxu0 0.0
      %1800 = vmatpush.msra.mxu0 0.0
      %1801 = vmatpush.msra.mxu0 0.0
      %1802 = vmatpush.msra.mxu0 0.0
      %1803 = vmatpush.msra.mxu0 0.0
      %1804 = vmatpush.msra.mxu0 0.0
      %1805 = vmatpush.msra.mxu0 0.0
      %1806 = vmatpush.msra.mxu0 0.0
      %1807 = vmatpush.msra.mxu0 0.0
      %1808 = vmatpush.msra.mxu0 0.0
      %1809 = vmatpush.msra.mxu0 0.0
      %v1810 = vand.u32 %v1617, 4294901760
      %v1811 = vsub.f32 %v1617, %v1810
      %v1812 = vand.u32 %v1811, 4294901760
      %v1813 = vsub.f32 %v1811, %v1812
      %v1814 = vand.u32 %v1813, 4294901760
      %1815 = vmatpush.msra.mxu0 %v1814
      %v1816 = vand.u32 %v1621, 4294901760
      %1817 = vmatmul.f32.gmra.mxu0 %v1816
      %v1818 = vpop.f32.mrf.mxu0
      %v1819 = vadd.f32 %v1793, %v1818
      %1820 = vdwg.mxu0
      %1821 = vmatpush.msra.mxu0 0.0
      %1822 = vmatpush.msra.mxu0 0.0
      %1823 = vmatpush.msra.mxu0 0.0
      %1824 = vmatpush.msra.mxu0 0.0
      %1825 = vmatpush.msra.mxu0 0.0
      %1826 = vmatpush.msra.mxu0 0.0
      %1827 = vmatpush.msra.mxu0 0.0
      %1828 = vmatpush.msra.mxu0 0.0
      %1829 = vmatpush.msra.mxu0 0.0
      %1830 = vmatpush.msra.mxu0 0.0
      %1831 = vmatpush.msra.mxu0 0.0
      %1832 = vmatpush.msra.mxu0 0.0
      %1833 = vmatpush.msra.mxu0 0.0
      %1834 = vmatpush.msra.mxu0 0.0
      %1835 = vmatpush.msra.mxu0 0.0
      %v1836 = vand.u32 %v1617, 4294901760
      %v1837 = vsub.f32 %v1617, %v1836
      %1838 = vmatpush.msra.mxu0 %v1837
      %v1839 = vand.u32 %v1621, 4294901760
      %v1840 = vsub.f32 %v1621, %v1839
      %1841 = vmatmul.f32.gmra.mxu0 %v1840
      %v1842 = vpop.f32.mrf.mxu0
      %v1843 = vadd.f32 %v1819, %v1842
      %1844 = vdwg.mxu0
      %1845 = vmatpush.msra.mxu0 0.0
      %1846 = vmatpush.msra.mxu0 0.0
      %1847 = vmatpush.msra.mxu0 0.0
      %1848 = vmatpush.msra.mxu0 0.0
      %1849 = vmatpush.msra.mxu0 0.0
      %1850 = vmatpush.msra.mxu0 0.0
      %1851 = vmatpush.msra.mxu0 0.0
      %1852 = vmatpush.msra.mxu0 0.0
      %1853 = vmatpush.msra.mxu0 0.0
      %1854 = vmatpush.msra.mxu0 0.0
      %1855 = vmatpush.msra.mxu0 0.0
      %1856 = vmatpush.msra.mxu0 0.0
      %1857 = vmatpush.msra.mxu0 0.0
      %1858 = vmatpush.msra.mxu0 0.0
      %1859 = vmatpush.msra.mxu0 0.0
      %v1860 = vand.u32 %v1617, 4294901760
      %1861 = vmatpush.msra.mxu0 %v1860
      %v1862 = vand.u32 %v1621, 4294901760
      %v1863 = vsub.f32 %v1621, %v1862
      %v1864 = vand.u32 %v1863, 4294901760
      %1865 = vmatmul.f32.gmra.mxu0 %v1864
      %v1866 = vpop.f32.mrf.mxu0
      %v1867 = vadd.f32 %v1843, %v1866
      %1868 = vdwg.mxu0
      %1869 = vmatpush.msra.mxu0 0.0
      %1870 = vmatpush.msra.mxu0 0.0
      %1871 = vmatpush.msra.mxu0 0.0
      %1872 = vmatpush.msra.mxu0 0.0
      %1873 = vmatpush.msra.mxu0 0.0
      %1874 = vmatpush.msra.mxu0 0.0
      %1875 = vmatpush.msra.mxu0 0.0
      %1876 = vmatpush.msra.mxu0 0.0
      %1877 = vmatpush.msra.mxu0 0.0
      %1878 = vmatpush.msra.mxu0 0.0
      %1879 = vmatpush.msra.mxu0 0.0
      %1880 = vmatpush.msra.mxu0 0.0
      %1881 = vmatpush.msra.mxu0 0.0
      %1882 = vmatpush.msra.mxu0 0.0
      %1883 = vmatpush.msra.mxu0 0.0
      %v1884 = vand.u32 %v1617, 4294901760
      %v1885 = vsub.f32 %v1617, %v1884
      %v1886 = vand.u32 %v1885, 4294901760
      %1887 = vmatpush.msra.mxu0 %v1886
      %v1888 = vand.u32 %v1621, 4294901760
      %1889 = vmatmul.f32.gmra.mxu0 %v1888
      %v1890 = vpop.f32.mrf.mxu0
      %v1891 = vadd.f32 %v1867, %v1890
      %1892 = vdwg.mxu0
      %1893 = vmatpush.msra.mxu0 0.0
      %1894 = vmatpush.msra.mxu0 0.0
      %1895 = vmatpush.msra.mxu0 0.0
      %1896 = vmatpush.msra.mxu0 0.0
      %1897 = vmatpush.msra.mxu0 0.0
      %1898 = vmatpush.msra.mxu0 0.0
      %1899 = vmatpush.msra.mxu0 0.0
      %1900 = vmatpush.msra.mxu0 0.0
      %1901 = vmatpush.msra.mxu0 0.0
      %1902 = vmatpush.msra.mxu0 0.0
      %1903 = vmatpush.msra.mxu0 0.0
      %1904 = vmatpush.msra.mxu0 0.0
      %1905 = vmatpush.msra.mxu0 0.0
      %1906 = vmatpush.msra.mxu0 0.0
      %1907 = vmatpush.msra.mxu0 0.0
      %v1908 = vand.u32 %v1617, 4294901760
      %1909 = vmatpush.msra.mxu0 %v1908
      %v1910 = vand.u32 %v1621, 4294901760
      %1911 = vmatmul.f32.gmra.mxu0 %v1910
      %v1912 = vpop.f32.mrf.mxu0
      %v1913 = vadd.f32 %v1891, %v1912
      %1914 = vdwg.mxu0
      %v1915 = vadd.f32 %v1767, %v1913
      %1916 = vadd.xlane.f32.xlu0 %v1915
      %v1917 = vpop.xlane.xlu0 %1916
      %v1918 = vmul.f32 %v1917, %v597
      %v1919 = vmul.f32 %v1767, %v1767
      %v1920 = vmul.f32 %v1913, %v1913
      %v1921 = vadd.f32 %v1919, %v1920
      %1922 = vadd.xlane.f32.xlu0 %v1921
      %v1923 = vpop.xlane.xlu0 %1922
      %v1924 = vmul.f32 %v1923, %v597
      %v1925 = vmul.f32 %v1918, %v1918
      %v1926 = vsub.f32 %v1924, %v1925
      %v1927 = vmax.f32 %v1926, 0.0
      %v1928 = vsub.f32 %v1767, %v1918
      %v1929 = vsub.f32 %v1913, %v1918
      %v1930 = vadd.f32 %v1927, 1e-05
      %v1931 = vrsqrt.pop %v1930
      %v1932 = vmul.f32 %v1931, %v1930
      %v1933 = vmul.f32 %v1932, %v1931
      %v1934 = vmul.f32 0.5, %v1933
      %v1935 = vsub.f32 1.5, %v1934
      %v1936 = vmul.f32 %v1931, %v1935
      %vm1937 = vweird.f32 %v1930
      %vm1938 = vweird.f32 %v1931
      %vm1939 = vmor %vm1937, %vm1938
      %v1940 = vsel %vm1939, %v1931, %v1936
      %v1941 = vmul.f32 %v1928, %v1940
      %v1942 = vmul.f32 %v1929, %v1940
      %vm1943 = vcmp.gt.f32.partialorder %v1941, 0.0
      %vm1944 = vcmp.gt.f32.partialorder %v1942, 0.0
      %v1945 = vmul.f32 %v1941, 0.01
      %v1946 = vmul.f32 %v1942, 0.01
      %v1947 = vsel %vm1943, %v1941, %v1945
      %v1948 = vsel %vm1944, %v1942, %v1946
      %1949 = vst [vmem:[%s170] sm:$0xff] %v1947
      %1950 = vst [vmem:[%s170 + $0x8] sm:$0xff] %v1948
      %p1951 = scmp.lt.s32.totalorder %s14, 1
      %s1952 = scalar_select %p1951, %s14, 1
      %s1953 = smul.addr %s1952, 2
      %s1954 = smul.addr %s1953, 8
      %s1955 = scalar_lea.vmem %s3, %s1954
      // Predicated region
      $region33: #{sparse_proj_layer.1} parent=31 // pred_check
        %p1956 = pneg %p100
      $region34: #{sparse_proj_layer.1} parent=31 // pred_check_branch
        %1958 = sbr.rel (%p1956) target = $region36
      $region35: #{sparse_proj_layer.1} parent=31 // pred_region
        _
      $region36: #{sparse_proj_layer.1} parent=31 // pred_fallthru
        _
    $region32: #{sparse_proj_layer.1} parent=5 // pred_fallthru
      _
    %p1959 = scmp.le.s32.totalorder 2, %s9
    // Predicated region
    $region37: #{sparse_proj_layer.1} parent=5 // pred_check
      %p1960 = pneg %p1959
    $region38: #{sparse_proj_layer.1} parent=5 // pred_check_branch
      %1962 = sbr.rel (%p1960) target = $region40
    $region39: #{sparse_proj_layer.1} parent=5 // pred_region
      %s1963 = ssub.s32 %s9, 2
      // Predicated region
      $region41: #{sparse_proj_layer.1} parent=39 // pred_check
        %p1964 = pneg %p106
      $region42: #{sparse_proj_layer.1} parent=39 // pred_check_branch
        %1966 = sbr.rel (%p1964) target = $region44
      $region43: #{sparse_proj_layer.1} parent=39 // pred_region
        %p1967 = scmp.lt.s32.totalorder %s15, 1
        %s1968 = scalar_select %p1967, %s15, 1
        %s1969 = smul.addr %s1968, 2
        %s1970 = smul.addr %s1969, 8
        %s1971 = scalar_lea.vmem %s3, %s1970
      $region44: #{sparse_proj_layer.1} parent=39 // pred_fallthru
        _
    $region40: #{sparse_proj_layer.1} parent=5 // pred_fallthru
      _
  $region6: #{sparse_proj_layer.1} parent=0 // loop_footer
    %s13 = sadd.s32 1, %s9
  $region7: #{sparse_proj_layer.1} parent=0 // loop_footer_branch
    %8 = sbr.rel target = $region3
  $region8: #{sparse_proj_layer.1} parent=0 // loop_exit
    _

</llo_original>
